<compile_context>
chip_gen: v5e
topology: v5e:2x2
jax: 0.10.0
libtpu: 0.0.40
codegen_flags: <defaults>
</compile_context>

<pallas_src>
import jax
import jax.numpy as jnp
from jax.experimental import pallas as pl
from jax.experimental.pallas import tpu as pltpu

INPUT_SIZE = 40
OUTPUT_SIZE = 18
CONV_OUT = INPUT_SIZE - 3 + 1  # 38
HIDDEN = [200, 500, 500, 300, 100]

# Lane-padded (multiple-of-128) widths.
IN_PAD = 128
H_PAD = [256, 512, 512, 384, 128]
OUT_PAD = 128


def betternn_kernel(x_ref,
                    w1_ref, b1_ref, w2_ref, b2_ref, w3_ref, b3_ref,
                    w4_ref, b4_ref, w5_ref, b5_ref, w6_ref, b6_ref,
                    out_ref):
    def dense(h, w_ref, b_ref, relu):
        # bf16 operands, f32 accumulation on the MXU; bias/ReLU in f32 on the VPU.
        acc = jnp.dot(h, w_ref[...], preferred_element_type=jnp.float32) + b_ref[...]
        if relu:
            return jnp.maximum(acc, 0.0).astype(jnp.bfloat16)
        return acc

    h = x_ref[...]                        # (TB, 128) bf16; conv already folded into fc1
    h = dense(h, w1_ref, b1_ref, True)    # (TB, 256)
    h = dense(h, w2_ref, b2_ref, True)    # (TB, 512)
    h = dense(h, w3_ref, b3_ref, True)    # (TB, 512)
    h = dense(h, w4_ref, b4_ref, True)    # (TB, 384)
    h = dense(h, w5_ref, b5_ref, True)    # (TB, 128)
    h = dense(h, w6_ref, b6_ref, False)   # (TB, 128) f32
    out_ref[...] = h


def _pad2(a, rows, cols):
    out = jnp.zeros((rows, cols), a.dtype)
    return out.at[:a.shape[0], :a.shape[1]].set(a)


def _round16(n):
    return ((n + 15) // 16) * 16


def prepare_params(params):
    """Fold conv into fc1, zero-pad all dims to multiples of 128, cast weights to bf16."""
    (conv_w, conv_b, w1, b1, w2, b2, w3, b3, w4, b4, w5, b5, w6, b6) = params

    # y = x @ C + conv_b with C[j+k, j] = conv_w[k]  (valid conv, k=3)
    # => h1 = relu(x @ (C @ W1) + conv_b * sum_rows(W1) + b1)
    C = jnp.zeros((INPUT_SIZE, CONV_OUT), jnp.float32)
    idx = jnp.arange(CONV_OUT)
    for k in range(3):
        C = C.at[idx + k, idx].set(conv_w[k])
    w1f = C @ w1
    b1f = conv_b[0] * jnp.sum(w1, axis=0, keepdims=True) + b1

    in_pads = [IN_PAD] + H_PAD
    out_pads = H_PAD + [OUT_PAD]
    ws = [w1f, w2, w3, w4, w5, w6]
    bs = [b1f, b2, b3, b4, b5, b6]

    prepared = []
    for w, b, ip, op in zip(ws, bs, in_pads, out_pads):
        prepared.append(_pad2(w, ip, op).astype(jnp.bfloat16))  # bf16 weights
        prepared.append(_pad2(b, 1, op))                        # f32 biases (1, out_pad)
    return tuple(prepared)


# Padded FLOPs of one batch row through the 6 matmuls (for the cost estimate).
_FLOPS_PER_ROW = 2 * (IN_PAD * H_PAD[0] + H_PAD[0] * H_PAD[1] + H_PAD[1] * H_PAD[2]
                      + H_PAD[2] * H_PAD[3] + H_PAD[3] * H_PAD[4] + H_PAD[4] * OUT_PAD)


def betternn_forward(x, prepared_params, *, tb=512):
    B = x.shape[0]

    # Batch padded only to the bf16 sublane tile (<= 15 extra rows, not to a tb multiple).
    b16 = _round16(B)

    # Batch tile: multiple of 16, capped at 1024, and at most round16(B/2) so the grid has
    # >= 2 blocks whenever possible (keeps both v7x TensorCores busy via "parallel" axis).
    tb_eff = min(tb, 1024, _round16(pl.cdiv(B, 2)))
    tb_eff = max(16, min(tb_eff, b16))
    n_blocks = pl.cdiv(b16, tb_eff)

    # Lane pad 40 -> 128 and cast to bf16 (halves x DMA, matches MXU operand dtype).
    x_pad = jnp.zeros((b16, IN_PAD), jnp.bfloat16)
    x_pad = x_pad.at[:B, :INPUT_SIZE].set(x.astype(jnp.bfloat16))

    def const_map(i):
        return (0, 0)

    in_specs = [pl.BlockSpec((tb_eff, IN_PAD), lambda i: (i, 0))]
    # Weights/biases: full-array blocks with constant index_map -> VMEM-resident, no re-DMA.
    in_specs += [pl.BlockSpec(p.shape, const_map) for p in prepared_params]

    weight_bytes = sum(int(p.size) * p.dtype.itemsize for p in prepared_params)
    cost = pl.CostEstimate(
        flops=int(b16) * _FLOPS_PER_ROW,
        transcendentals=0,
        bytes_accessed=int(b16) * (IN_PAD * 2 + OUT_PAD * 4) + weight_bytes,
    )

    out = pl.pallas_call(
        betternn_kernel,
        out_shape=jax.ShapeDtypeStruct((b16, OUT_PAD), jnp.float32),
        grid=(n_blocks,),
        in_specs=in_specs,
        out_specs=pl.BlockSpec((tb_eff, OUT_PAD), lambda i: (i, 0)),
        compiler_params=pltpu.CompilerParams(
            dimension_semantics=("parallel",),
            vmem_limit_bytes=32 * 1024 * 1024,
        ),
        cost_estimate=cost,
    )(x_pad, *prepared_params)

    return out[:B, :OUTPUT_SIZE]


def init_params(key):
    """Deterministic synthetic parameters matching BetterNN's shapes.

    Dense weights are stored transposed relative to torch.nn.Linear:
    torch weight (out, in) -> here (in, out), so y = x @ W + b.
    """
    keys = jax.random.split(key, 16)
    ki = iter(range(16))

    def dense(in_dim, out_dim):
        kw = keys[next(ki)]
        kb = keys[next(ki)]
        scale = 1.0 / jnp.sqrt(jnp.float32(in_dim))
        w = jax.random.uniform(kw, (in_dim, out_dim), jnp.float32, -scale, scale)
        b = jax.random.uniform(kb, (1, out_dim), jnp.float32, -scale, scale)
        return w, b

    kcw = keys[next(ki)]
    kcb = keys[next(ki)]
    cscale = 1.0 / jnp.sqrt(3.0)
    conv_w = jax.random.uniform(kcw, (3,), jnp.float32, -cscale, cscale)
    conv_b = jax.random.uniform(kcb, (1,), jnp.float32, -cscale, cscale)

    w1, b1 = dense(CONV_OUT, HIDDEN[0])     # 38 -> 200
    w2, b2 = dense(HIDDEN[0], HIDDEN[1])    # 200 -> 500
    w3, b3 = dense(HIDDEN[1], HIDDEN[2])    # 500 -> 500
    w4, b4 = dense(HIDDEN[2], HIDDEN[3])    # 500 -> 300
    w5, b5 = dense(HIDDEN[3], HIDDEN[4])    # 300 -> 100
    w6, b6 = dense(HIDDEN[4], OUTPUT_SIZE)  # 100 -> 18

    return (conv_w, conv_b, w1, b1, w2, b2, w3, b3, w4, b4, w5, b5, w6, b6)


def reference_forward(x, params):
    """Plain-JAX f32 reference of the PyTorch forward (conv not folded)."""
    (conv_w, conv_b, w1, b1, w2, b2, w3, b3, w4, b4, w5, b5, w6, b6) = params
    y = (conv_w[0] * x[:, 0:CONV_OUT]
         + conv_w[1] * x[:, 1:CONV_OUT + 1]
         + conv_w[2] * x[:, 2:CONV_OUT + 2]) + conv_b[0]
    relu = lambda h: jnp.maximum(h, 0.0)
    h = relu(y @ w1 + b1)
    h = relu(h @ w2 + b2)
    h = relu(h @ w3 + b3)
    h = relu(h @ w4 + b4)
    h = relu(h @ w5 + b5)
    return h @ w6 + b6


if __name__ == "__main__":
    key = jax.random.PRNGKey(0)
    kx, kp = jax.random.split(key)

    params = init_params(kp)
    prepared = prepare_params(params)

    # B=8: single-block (padded to 16 rows).  B=40: two blocks with a ragged last block
    # (exercises multi-block pipelining and masked partial stores).
    for B in (8, 40):
        x = jax.random.normal(jax.random.fold_in(kx, B), (B, INPUT_SIZE), jnp.float32)
        out = jax.block_until_ready(betternn_forward(x, prepared))
        ref = reference_forward(x, params)
        assert out.shape == (B, OUTPUT_SIZE)
        # bf16 matmul operands + conv folding change numerics slightly -> relaxed tolerance.
        assert jnp.allclose(out, ref, atol=2e-2, rtol=2e-2), f"mismatch vs reference (B={B})"

    print("KERNEL_OK")
</pallas_src>

<mosaic_0001>
module attributes {stable_mosaic.version = 11 : i64} {
  func.func @betternn_kernel(%arg0: i32, %arg1: memref<16x128xbf16, #tpu.memory_space<vmem>>, %arg2: memref<128x256xbf16, #tpu.memory_space<vmem>>, %arg3: memref<1x256xf32, #tpu.memory_space<vmem>>, %arg4: memref<256x512xbf16, #tpu.memory_space<vmem>>, %arg5: memref<1x512xf32, #tpu.memory_space<vmem>>, %arg6: memref<512x512xbf16, #tpu.memory_space<vmem>>, %arg7: memref<1x512xf32, #tpu.memory_space<vmem>>, %arg8: memref<512x384xbf16, #tpu.memory_space<vmem>>, %arg9: memref<1x384xf32, #tpu.memory_space<vmem>>, %arg10: memref<384x128xbf16, #tpu.memory_space<vmem>>, %arg11: memref<1x128xf32, #tpu.memory_space<vmem>>, %arg12: memref<128x128xbf16, #tpu.memory_space<vmem>>, %arg13: memref<1x128xf32, #tpu.memory_space<vmem>>, %arg14: memref<16x128xf32, #tpu.memory_space<vmem>>) attributes {dimension_semantics = [#tpu.dimension_semantics<parallel>], iteration_bounds = array<i64: 1>, scalar_prefetch = 0 : i64, scratch_operands = 0 : i64, tpu.core_type = #tpu.core_type<tc>, window_params = [{transform_indices = @transform_0, window_bounds = array<i64: 16, 128>}, {pipeline_mode = #tpu.pipeline_mode<synchronous>, transform_indices = @transform_1, window_bounds = array<i64: 128, 256>}, {pipeline_mode = #tpu.pipeline_mode<synchronous>, transform_indices = @transform_2, window_bounds = array<i64: 1, 256>}, {pipeline_mode = #tpu.pipeline_mode<synchronous>, transform_indices = @transform_3, window_bounds = array<i64: 256, 512>}, {pipeline_mode = #tpu.pipeline_mode<synchronous>, transform_indices = @transform_4, window_bounds = array<i64: 1, 512>}, {pipeline_mode = #tpu.pipeline_mode<synchronous>, transform_indices = @transform_5, window_bounds = array<i64: 512, 512>}, {pipeline_mode = #tpu.pipeline_mode<synchronous>, transform_indices = @transform_6, window_bounds = array<i64: 1, 512>}, {pipeline_mode = #tpu.pipeline_mode<synchronous>, transform_indices = @transform_7, window_bounds = array<i64: 512, 384>}, {pipeline_mode = #tpu.pipeline_mode<synchronous>, transform_indices = @transform_8, window_bounds = array<i64: 1, 384>}, {pipeline_mode = #tpu.pipeline_mode<synchronous>, transform_indices = @transform_9, window_bounds = array<i64: 384, 128>}, {pipeline_mode = #tpu.pipeline_mode<synchronous>, transform_indices = @transform_10, window_bounds = array<i64: 1, 128>}, {pipeline_mode = #tpu.pipeline_mode<synchronous>, transform_indices = @transform_11, window_bounds = array<i64: 128, 128>}, {pipeline_mode = #tpu.pipeline_mode<synchronous>, transform_indices = @transform_12, window_bounds = array<i64: 1, 128>}, {transform_indices = @transform_13, window_bounds = array<i64: 16, 128>}]} {
    %c0 = arith.constant 0 : index
    %c0_0 = arith.constant 0 : index
    %0 = vector.load %arg1[%c0, %c0_0] : memref<16x128xbf16, #tpu.memory_space<vmem>>, vector<16x128xbf16>
    %c0_1 = arith.constant 0 : index
    %c0_2 = arith.constant 0 : index
    %1 = vector.load %arg2[%c0_1, %c0_2] : memref<128x256xbf16, #tpu.memory_space<vmem>>, vector<128x256xbf16>
    %cst = arith.constant dense<0.000000e+00> : vector<16x256xf32>
    %2 = tpu.matmul %0, %1, %cst {dimension_numbers = #tpu.dot_dimension_numbers<[1], [0], [0], [1], [0, 0, 1, 1], [], []>} : vector<16x128xbf16>, vector<128x256xbf16>, vector<16x256xf32> -> vector<16x256xf32>
    %c0_3 = arith.constant 0 : index
    %c0_4 = arith.constant 0 : index
    %3 = vector.load %arg3[%c0_3, %c0_4] : memref<1x256xf32, #tpu.memory_space<vmem>>, vector<1x256xf32>
    %4 = vector.broadcast %3 : vector<1x256xf32> to vector<16x256xf32>
    %5 = arith.addf %2, %4 : vector<16x256xf32>
    %cst_5 = arith.constant 0.000000e+00 : f32
    %6 = vector.broadcast %cst_5 : f32 to vector<16x256xf32>
    %7 = arith.maximumf %5, %6 : vector<16x256xf32>
    %8 = arith.truncf %7 : vector<16x256xf32> to vector<16x256xbf16>
    %c0_6 = arith.constant 0 : index
    %c0_7 = arith.constant 0 : index
    %9 = vector.load %arg4[%c0_6, %c0_7] : memref<256x512xbf16, #tpu.memory_space<vmem>>, vector<256x512xbf16>
    %cst_8 = arith.constant dense<0.000000e+00> : vector<16x512xf32>
    %10 = tpu.matmul %8, %9, %cst_8 {dimension_numbers = #tpu.dot_dimension_numbers<[1], [0], [0], [1], [0, 0, 1, 1], [], []>} : vector<16x256xbf16>, vector<256x512xbf16>, vector<16x512xf32> -> vector<16x512xf32>
    %c0_9 = arith.constant 0 : index
    %c0_10 = arith.constant 0 : index
    %11 = vector.load %arg5[%c0_9, %c0_10] : memref<1x512xf32, #tpu.memory_space<vmem>>, vector<1x512xf32>
    %12 = vector.broadcast %11 : vector<1x512xf32> to vector<16x512xf32>
    %13 = arith.addf %10, %12 : vector<16x512xf32>
    %cst_11 = arith.constant 0.000000e+00 : f32
    %14 = vector.broadcast %cst_11 : f32 to vector<16x512xf32>
    %15 = arith.maximumf %13, %14 : vector<16x512xf32>
    %16 = arith.truncf %15 : vector<16x512xf32> to vector<16x512xbf16>
    %c0_12 = arith.constant 0 : index
    %c0_13 = arith.constant 0 : index
    %17 = vector.load %arg6[%c0_12, %c0_13] : memref<512x512xbf16, #tpu.memory_space<vmem>>, vector<512x512xbf16>
    %cst_14 = arith.constant dense<0.000000e+00> : vector<16x512xf32>
    %18 = tpu.matmul %16, %17, %cst_14 {dimension_numbers = #tpu.dot_dimension_numbers<[1], [0], [0], [1], [0, 0, 1, 1], [], []>} : vector<16x512xbf16>, vector<512x512xbf16>, vector<16x512xf32> -> vector<16x512xf32>
    %c0_15 = arith.constant 0 : index
    %c0_16 = arith.constant 0 : index
    %19 = vector.load %arg7[%c0_15, %c0_16] : memref<1x512xf32, #tpu.memory_space<vmem>>, vector<1x512xf32>
    %20 = vector.broadcast %19 : vector<1x512xf32> to vector<16x512xf32>
    %21 = arith.addf %18, %20 : vector<16x512xf32>
    %cst_17 = arith.constant 0.000000e+00 : f32
    %22 = vector.broadcast %cst_17 : f32 to vector<16x512xf32>
    %23 = arith.maximumf %21, %22 : vector<16x512xf32>
    %24 = arith.truncf %23 : vector<16x512xf32> to vector<16x512xbf16>
    %c0_18 = arith.constant 0 : index
    %c0_19 = arith.constant 0 : index
    %25 = vector.load %arg8[%c0_18, %c0_19] : memref<512x384xbf16, #tpu.memory_space<vmem>>, vector<512x384xbf16>
    %cst_20 = arith.constant dense<0.000000e+00> : vector<16x384xf32>
    %26 = tpu.matmul %24, %25, %cst_20 {dimension_numbers = #tpu.dot_dimension_numbers<[1], [0], [0], [1], [0, 0, 1, 1], [], []>} : vector<16x512xbf16>, vector<512x384xbf16>, vector<16x384xf32> -> vector<16x384xf32>
    %c0_21 = arith.constant 0 : index
    %c0_22 = arith.constant 0 : index
    %27 = vector.load %arg9[%c0_21, %c0_22] : memref<1x384xf32, #tpu.memory_space<vmem>>, vector<1x384xf32>
    %28 = vector.broadcast %27 : vector<1x384xf32> to vector<16x384xf32>
    %29 = arith.addf %26, %28 : vector<16x384xf32>
    %cst_23 = arith.constant 0.000000e+00 : f32
    %30 = vector.broadcast %cst_23 : f32 to vector<16x384xf32>
    %31 = arith.maximumf %29, %30 : vector<16x384xf32>
    %32 = arith.truncf %31 : vector<16x384xf32> to vector<16x384xbf16>
    %c0_24 = arith.constant 0 : index
    %c0_25 = arith.constant 0 : index
    %33 = vector.load %arg10[%c0_24, %c0_25] : memref<384x128xbf16, #tpu.memory_space<vmem>>, vector<384x128xbf16>
    %cst_26 = arith.constant dense<0.000000e+00> : vector<16x128xf32>
    %34 = tpu.matmul %32, %33, %cst_26 {dimension_numbers = #tpu.dot_dimension_numbers<[1], [0], [0], [1], [0, 0, 1, 1], [], []>} : vector<16x384xbf16>, vector<384x128xbf16>, vector<16x128xf32> -> vector<16x128xf32>
    %c0_27 = arith.constant 0 : index
    %c0_28 = arith.constant 0 : index
    %35 = vector.load %arg11[%c0_27, %c0_28] : memref<1x128xf32, #tpu.memory_space<vmem>>, vector<1x128xf32>
    %36 = vector.broadcast %35 : vector<1x128xf32> to vector<16x128xf32>
    %37 = arith.addf %34, %36 : vector<16x128xf32>
    %cst_29 = arith.constant 0.000000e+00 : f32
    %38 = vector.broadcast %cst_29 : f32 to vector<16x128xf32>
    %39 = arith.maximumf %37, %38 : vector<16x128xf32>
    %40 = arith.truncf %39 : vector<16x128xf32> to vector<16x128xbf16>
    %c0_30 = arith.constant 0 : index
    %c0_31 = arith.constant 0 : index
    %41 = vector.load %arg12[%c0_30, %c0_31] : memref<128x128xbf16, #tpu.memory_space<vmem>>, vector<128x128xbf16>
    %cst_32 = arith.constant dense<0.000000e+00> : vector<16x128xf32>
    %42 = tpu.matmul %40, %41, %cst_32 {dimension_numbers = #tpu.dot_dimension_numbers<[1], [0], [0], [1], [0, 0, 1, 1], [], []>} : vector<16x128xbf16>, vector<128x128xbf16>, vector<16x128xf32> -> vector<16x128xf32>
    %c0_33 = arith.constant 0 : index
    %c0_34 = arith.constant 0 : index
    %43 = vector.load %arg13[%c0_33, %c0_34] : memref<1x128xf32, #tpu.memory_space<vmem>>, vector<1x128xf32>
    %44 = vector.broadcast %43 : vector<1x128xf32> to vector<16x128xf32>
    %45 = arith.addf %42, %44 : vector<16x128xf32>
    %c0_35 = arith.constant 0 : index
    %c0_36 = arith.constant 0 : index
    %46 = vector.load %arg14[%c0_35, %c0_36] : memref<16x128xf32, #tpu.memory_space<vmem>>, vector<16x128xf32>
    tpu.vector_store %arg14[%c0_35, %c0_36], %45 {strides = array<i32>} : memref<16x128xf32, #tpu.memory_space<vmem>>, vector<16x128xf32>,
    return
  }
  func.func @transform_0(%arg0: i32) -> (i32, i32) {
    %c0_i32 = arith.constant 0 : i32
    %c0_i32_0 = arith.constant 0 : i32
    return %arg0, %c0_i32 : i32, i32
  }
  func.func @transform_1(%arg0: i32) -> (i32, i32) {
    %c0_i32 = arith.constant 0 : i32
    %c0_i32_0 = arith.constant 0 : i32
    %c0_i32_1 = arith.constant 0 : i32
    return %c0_i32, %c0_i32_0 : i32, i32
  }
  func.func @transform_2(%arg0: i32) -> (i32, i32) {
    %c0_i32 = arith.constant 0 : i32
    %c0_i32_0 = arith.constant 0 : i32
    %c0_i32_1 = arith.constant 0 : i32
    return %c0_i32, %c0_i32_0 : i32, i32
  }
  func.func @transform_3(%arg0: i32) -> (i32, i32) {
    %c0_i32 = arith.constant 0 : i32
    %c0_i32_0 = arith.constant 0 : i32
    %c0_i32_1 = arith.constant 0 : i32
    return %c0_i32, %c0_i32_0 : i32, i32
  }
  func.func @transform_4(%arg0: i32) -> (i32, i32) {
    %c0_i32 = arith.constant 0 : i32
    %c0_i32_0 = arith.constant 0 : i32
    %c0_i32_1 = arith.constant 0 : i32
    return %c0_i32, %c0_i32_0 : i32, i32
  }
  func.func @transform_5(%arg0: i32) -> (i32, i32) {
    %c0_i32 = arith.constant 0 : i32
    %c0_i32_0 = arith.constant 0 : i32
    %c0_i32_1 = arith.constant 0 : i32
    return %c0_i32, %c0_i32_0 : i32, i32
  }
  func.func @transform_6(%arg0: i32) -> (i32, i32) {
    %c0_i32 = arith.constant 0 : i32
    %c0_i32_0 = arith.constant 0 : i32
    %c0_i32_1 = arith.constant 0 : i32
    return %c0_i32, %c0_i32_0 : i32, i32
  }
  func.func @transform_7(%arg0: i32) -> (i32, i32) {
    %c0_i32 = arith.constant 0 : i32
    %c0_i32_0 = arith.constant 0 : i32
    %c0_i32_1 = arith.constant 0 : i32
    return %c0_i32, %c0_i32_0 : i32, i32
  }
  func.func @transform_8(%arg0: i32) -> (i32, i32) {
    %c0_i32 = arith.constant 0 : i32
    %c0_i32_0 = arith.constant 0 : i32
    %c0_i32_1 = arith.constant 0 : i32
    return %c0_i32, %c0_i32_0 : i32, i32
  }
  func.func @transform_9(%arg0: i32) -> (i32, i32) {
    %c0_i32 = arith.constant 0 : i32
    %c0_i32_0 = arith.constant 0 : i32
    %c0_i32_1 = arith.constant 0 : i32
    return %c0_i32, %c0_i32_0 : i32, i32
  }
  func.func @transform_10(%arg0: i32) -> (i32, i32) {
    %c0_i32 = arith.constant 0 : i32
    %c0_i32_0 = arith.constant 0 : i32
    %c0_i32_1 = arith.constant 0 : i32
    return %c0_i32, %c0_i32_0 : i32, i32
  }
  func.func @transform_11(%arg0: i32) -> (i32, i32) {
    %c0_i32 = arith.constant 0 : i32
    %c0_i32_0 = arith.constant 0 : i32
    %c0_i32_1 = arith.constant 0 : i32
    return %c0_i32, %c0_i32_0 : i32, i32
  }
  func.func @transform_12(%arg0: i32) -> (i32, i32) {
    %c0_i32 = arith.constant 0 : i32
    %c0_i32_0 = arith.constant 0 : i32
    %c0_i32_1 = arith.constant 0 : i32
    return %c0_i32, %c0_i32_0 : i32, i32
  }
  func.func @transform_13(%arg0: i32) -> (i32, i32) {
    %c0_i32 = arith.constant 0 : i32
    %c0_i32_0 = arith.constant 0 : i32
    return %arg0, %c0_i32 : i32, i32
  }
}

</mosaic_0001>

<llo_original>
// kernel: tpu_custom_call.1
$region0: #{tpu_custom_call.1}
  #allocation0 [shape = 'u32[]', space=smem, size = 0x4, offset = 0x4, fixed_abs, tag = 'smem constant byte address 0x4 - core index']
  #allocation1 [shape = 'u32[72,128]{1,0:T(1,128)}', space=vmem, size = 0x9000, scoped, tag = 'internal scratch']
  %s0 = inlined_call_operand.hbm [shape: bf16[16,128], index: 0, kind: input, shape index: {}]
  %s1 = inlined_call_operand.hbm [shape: bf16[128,256], index: 1, kind: input, shape index: {}]
  %s2 = inlined_call_operand.hbm [shape: f32[1,256], index: 2, kind: input, shape index: {}]
  %s3 = inlined_call_operand.hbm [shape: bf16[256,512], index: 3, kind: input, shape index: {}]
  %s4 = inlined_call_operand.hbm [shape: f32[1,512], index: 4, kind: input, shape index: {}]
  %s5 = inlined_call_operand.hbm [shape: bf16[512,512], index: 5, kind: input, shape index: {}]
  %s6 = inlined_call_operand.vmem [shape: f32[1,512], index: 6, kind: input, shape index: {}]
  %s7 = inlined_call_operand.hbm [shape: bf16[512,384], index: 7, kind: input, shape index: {}]
  %s8 = inlined_call_operand.vmem [shape: f32[1,384], index: 8, kind: input, shape index: {}]
  %s9 = inlined_call_operand.hbm [shape: bf16[384,128], index: 9, kind: input, shape index: {}]
  %s10 = inlined_call_operand.vmem [shape: f32[1,128], index: 10, kind: input, shape index: {}]
  %s11 = inlined_call_operand.hbm [shape: bf16[128,128], index: 11, kind: input, shape index: {}]
  %s12 = inlined_call_operand.vmem [shape: f32[1,128], index: 12, kind: input, shape index: {}]
  %s13 = inlined_call_operand.hbm [shape: f32[16,128], index: 13, kind: output, shape index: {}]
  %s14 = sld [smem:[#allocation0]]
  $region98: #{tpu_custom_call.1} parent=0
    _
  %s16 = ssub.s32 1, %s14
  %s17 = scalar_select 0, %s16, %s14
  $region1: #{tpu_custom_call.1} parent=0
    #allocation2 [shape = 'u8[4096]{0}', space=vmem, size = 0x1000, scoped, tag = 'input window, operand 0, single buffered']
    #allocation3 [shape = 's32[1]{0}', space=sflag, size = 0x4, scoped, tag = 'scoped memory for tpu_custom_call.1']
    #allocation4 [shape = 's32[1]{0}', space=sflag, size = 0x4, scoped, tag = 'scoped memory for tpu_custom_call.1']
    #allocation5 [shape = 'u8[65536]{0}', space=vmem, size = 0x10000, scoped, tag = 'input window, operand 1, single buffered']
    #allocation6 [shape = 's32[1]{0}', space=sflag, size = 0x4, scoped, tag = 'scoped memory for tpu_custom_call.1']
    #allocation7 [shape = 'u8[1024]{0}', space=vmem, size = 0x400, scoped, tag = 'input window, operand 2, single buffered']
    #allocation8 [shape = 'u8[262144]{0}', space=vmem, size = 0x40000, scoped, tag = 'input window, operand 3, single buffered']
    #allocation9 [shape = 's32[1]{0}', space=sflag, size = 0x4, scoped, tag = 'scoped memory for tpu_custom_call.1']
    #allocation10 [shape = 'u8[2048]{0}', space=vmem, size = 0x800, scoped, tag = 'input window, operand 4, single buffered']
    #allocation11 [shape = 'u8[524288]{0}', space=vmem, size = 0x80000, scoped, tag = 'input window, operand 5, single buffered']
    #allocation12 [shape = 's32[1]{0}', space=sflag, size = 0x4, scoped, tag = 'scoped memory for tpu_custom_call.1']
    #allocation13 [shape = 'u8[393216]{0}', space=vmem, size = 0x60000, scoped, tag = 'input window, operand 7, single buffered']
    #allocation14 [shape = 'u8[98304]{0}', space=vmem, size = 0x18000, scoped, tag = 'input window, operand 9, single buffered']
    #allocation15 [shape = 's32[1]{0}', space=sflag, size = 0x4, scoped, tag = 'scoped memory for tpu_custom_call.1']
    #allocation16 [shape = 'u8[32768]{0}', space=vmem, size = 0x8000, scoped, tag = 'input window, operand 11, single buffered']
    #allocation17 [shape = 'u8[8192]{0}', space=vmem, size = 0x2000, scoped, tag = 'output window, operand 0, single buffered']
    %18 = vsyncpa [#allocation3], 0
    %19 = vsyncpa [#allocation6], 0
    %20 = vsyncpa [#allocation9], 0
    %21 = vsyncpa [#allocation12], 0
    %22 = vsyncpa [#allocation15], 0
    %23 = vsyncpa [#allocation4], 0
    // Predicated region
    $region2: #{tpu_custom_call.1} parent=1 // pred_check
      _
    $region3: #{tpu_custom_call.1} parent=1 // pred_check_branch
      %25 = sbr.rel (0) target = $region5
    $region4: #{tpu_custom_call.1} parent=1 // pred_region
      %27 = vsyncadd [#allocation3], 0
      %s28 = sshll.u32 %s0, 4
      %s29 = int_to_ptr.hbm [resolvable:$true] %s28
      %s30 = sshll.u32 [#allocation2], 4
      %s31 = int_to_ptr.vmem [resolvable:$true] %s30
      %36 = dma.hbm_to_vmem [thread:$0]  %s29, 128, %s31, [#allocation3], 64, 64, 4
    $region5: #{tpu_custom_call.1} parent=1 // pred_fallthru
      _
    // Predicated region
    $region6: #{tpu_custom_call.1} parent=1 // pred_check
      _
    $region7: #{tpu_custom_call.1} parent=1 // pred_check_branch
      %38 = sbr.rel (0) target = $region9
    $region8: #{tpu_custom_call.1} parent=1 // pred_region
      %40 = vsyncadd [#allocation6], 0
      %s41 = sshll.u32 %s1, 4
      %s42 = int_to_ptr.hbm [resolvable:$true] %s41
      %s43 = sshll.u32 [#allocation5], 4
      %s44 = int_to_ptr.vmem [resolvable:$true] %s43
      %49 = dma.hbm_to_vmem [thread:$0]  %s42, 2048, %s44, [#allocation6], 128, 128, 8
    $region9: #{tpu_custom_call.1} parent=1 // pred_fallthru
      _
    // Predicated region
    $region10: #{tpu_custom_call.1} parent=1 // pred_check
      _
    $region11: #{tpu_custom_call.1} parent=1 // pred_check_branch
      %51 = sbr.rel (0) target = $region13
    $region12: #{tpu_custom_call.1} parent=1 // pred_region
      %53 = vsyncadd [#allocation6], 0
      %s55 = sshll.u32 %s2, 4
      %s56 = int_to_ptr.hbm [resolvable:$true] %s55
      %s57 = sshll.u32 [#allocation7], 4
      %s58 = int_to_ptr.vmem [resolvable:$true] %s57
      %60 = dma.hbm_to_vmem [thread:$0]  %s56, 32, %s58, [#allocation6]
    $region13: #{tpu_custom_call.1} parent=1 // pred_fallthru
      _
    // Predicated region
    $region14: #{tpu_custom_call.1} parent=1 // pred_check
      _
    $region15: #{tpu_custom_call.1} parent=1 // pred_check_branch
      %62 = sbr.rel (0) target = $region17
    $region16: #{tpu_custom_call.1} parent=1 // pred_region
      %64 = vsyncadd [#allocation9], 0
      %s65 = sshll.u32 %s3, 4
      %s66 = int_to_ptr.hbm [resolvable:$true] %s65
      %s67 = sshll.u32 [#allocation8], 4
      %s68 = int_to_ptr.vmem [resolvable:$true] %s67
      %73 = dma.hbm_to_vmem [thread:$0]  %s66, 8192, %s68, [#allocation9], 256, 256, 16
    $region17: #{tpu_custom_call.1} parent=1 // pred_fallthru
      _
    // Predicated region
    $region18: #{tpu_custom_call.1} parent=1 // pred_check
      _
    $region19: #{tpu_custom_call.1} parent=1 // pred_check_branch
      %75 = sbr.rel (0) target = $region21
    $region20: #{tpu_custom_call.1} parent=1 // pred_region
      %77 = vsyncadd [#allocation9], 0
      %s79 = sshll.u32 %s4, 4
      %s80 = int_to_ptr.hbm [resolvable:$true] %s79
      %s81 = sshll.u32 [#allocation10], 4
      %s82 = int_to_ptr.vmem [resolvable:$true] %s81
      %84 = dma.hbm_to_vmem [thread:$0]  %s80, 64, %s82, [#allocation9]
    $region21: #{tpu_custom_call.1} parent=1 // pred_fallthru
      _
    // Predicated region
    $region22: #{tpu_custom_call.1} parent=1 // pred_check
      _
    $region23: #{tpu_custom_call.1} parent=1 // pred_check_branch
      %86 = sbr.rel (0) target = $region25
    $region24: #{tpu_custom_call.1} parent=1 // pred_region
      %88 = vsyncadd [#allocation12], 0
      %s89 = sshll.u32 %s5, 4
      %s90 = int_to_ptr.hbm [resolvable:$true] %s89
      %s91 = sshll.u32 [#allocation11], 4
      %s92 = int_to_ptr.vmem [resolvable:$true] %s91
      %97 = dma.hbm_to_vmem [thread:$0]  %s90, 16384, %s92, [#allocation12], 256, 256, 16
    $region25: #{tpu_custom_call.1} parent=1 // pred_fallthru
      _
    // Predicated region
    $region26: #{tpu_custom_call.1} parent=1 // pred_check
      _
    $region27: #{tpu_custom_call.1} parent=1 // pred_check_branch
      %99 = sbr.rel (0) target = $region29
    $region28: #{tpu_custom_call.1} parent=1 // pred_region
      _
    $region29: #{tpu_custom_call.1} parent=1 // pred_fallthru
      _
    // Predicated region
    $region30: #{tpu_custom_call.1} parent=1 // pred_check
      _
    $region31: #{tpu_custom_call.1} parent=1 // pred_check_branch
      %101 = sbr.rel (0) target = $region33
    $region32: #{tpu_custom_call.1} parent=1 // pred_region
      %103 = vsyncadd [#allocation12], 0
      %s104 = sshll.u32 %s7, 4
      %s105 = int_to_ptr.hbm [resolvable:$true] %s104
      %s106 = sshll.u32 [#allocation13], 4
      %s107 = int_to_ptr.vmem [resolvable:$true] %s106
      %112 = dma.hbm_to_vmem [thread:$0]  %s105, 12288, %s107, [#allocation12], 192, 192, 12
    $region33: #{tpu_custom_call.1} parent=1 // pred_fallthru
      _
    // Predicated region
    $region34: #{tpu_custom_call.1} parent=1 // pred_check
      _
    $region35: #{tpu_custom_call.1} parent=1 // pred_check_branch
      %114 = sbr.rel (0) target = $region37
    $region36: #{tpu_custom_call.1} parent=1 // pred_region
      _
    $region37: #{tpu_custom_call.1} parent=1 // pred_fallthru
      _
    // Predicated region
    $region38: #{tpu_custom_call.1} parent=1 // pred_check
      _
    $region39: #{tpu_custom_call.1} parent=1 // pred_check_branch
      %116 = sbr.rel (0) target = $region41
    $region40: #{tpu_custom_call.1} parent=1 // pred_region
      %118 = vsyncadd [#allocation15], 0
      %s119 = sshll.u32 %s9, 4
      %s120 = int_to_ptr.hbm [resolvable:$true] %s119
      %s121 = sshll.u32 [#allocation14], 4
      %s122 = int_to_ptr.vmem [resolvable:$true] %s121
      %127 = dma.hbm_to_vmem [thread:$0]  %s120, 3072, %s122, [#allocation15], 64, 64, 4
    $region41: #{tpu_custom_call.1} parent=1 // pred_fallthru
      _
    // Predicated region
    $region42: #{tpu_custom_call.1} parent=1 // pred_check
      _
    $region43: #{tpu_custom_call.1} parent=1 // pred_check_branch
      %129 = sbr.rel (0) target = $region45
    $region44: #{tpu_custom_call.1} parent=1 // pred_region
      _
    $region45: #{tpu_custom_call.1} parent=1 // pred_fallthru
      _
    // Predicated region
    $region46: #{tpu_custom_call.1} parent=1 // pred_check
      _
    $region47: #{tpu_custom_call.1} parent=1 // pred_check_branch
      %131 = sbr.rel (0) target = $region49
    $region48: #{tpu_custom_call.1} parent=1 // pred_region
      %133 = vsyncadd [#allocation15], 0
      %s134 = sshll.u32 %s11, 4
      %s135 = int_to_ptr.hbm [resolvable:$true] %s134
      %s136 = sshll.u32 [#allocation16], 4
      %s137 = int_to_ptr.vmem [resolvable:$true] %s136
      %142 = dma.hbm_to_vmem [thread:$0]  %s135, 1024, %s137, [#allocation15], 64, 64, 4
    $region49: #{tpu_custom_call.1} parent=1 // pred_fallthru
      _
    // Predicated region
    $region50: #{tpu_custom_call.1} parent=1 // pred_check
      _
    $region51: #{tpu_custom_call.1} parent=1 // pred_check_branch
      %144 = sbr.rel (0) target = $region53
    $region52: #{tpu_custom_call.1} parent=1 // pred_region
      _
    $region53: #{tpu_custom_call.1} parent=1 // pred_fallthru
      _
    // Predicated region
    $region54: #{tpu_custom_call.1} parent=1 // pred_check
      _
    $region55: #{tpu_custom_call.1} parent=1 // pred_check_branch
      %146 = sbr.rel (0) target = $region57
    $region56: #{tpu_custom_call.1} parent=1 // pred_region
      %148 = dma.done [#allocation3], 128
    $region57: #{tpu_custom_call.1} parent=1 // pred_fallthru
      _
    // Predicated region
    $region58: #{tpu_custom_call.1} parent=1 // pred_check
      _
    $region59: #{tpu_custom_call.1} parent=1 // pred_check_branch
      %150 = sbr.rel (0) target = $region61
    $region60: #{tpu_custom_call.1} parent=1 // pred_region
      %152 = dma.done [#allocation6], 2048
    $region61: #{tpu_custom_call.1} parent=1 // pred_fallthru
      _
    // Predicated region
    $region62: #{tpu_custom_call.1} parent=1 // pred_check
      _
    $region63: #{tpu_custom_call.1} parent=1 // pred_check_branch
      %154 = sbr.rel (0) target = $region65
    $region64: #{tpu_custom_call.1} parent=1 // pred_region
      %156 = dma.done [#allocation6], 32
    $region65: #{tpu_custom_call.1} parent=1 // pred_fallthru
      _
    // Predicated region
    $region66: #{tpu_custom_call.1} parent=1 // pred_check
      _
    $region67: #{tpu_custom_call.1} parent=1 // pred_check_branch
      %158 = sbr.rel (0) target = $region69
    $region68: #{tpu_custom_call.1} parent=1 // pred_region
      %160 = dma.done [#allocation9], 8192
    $region69: #{tpu_custom_call.1} parent=1 // pred_fallthru
      _
    // Predicated region
    $region70: #{tpu_custom_call.1} parent=1 // pred_check
      _
    $region71: #{tpu_custom_call.1} parent=1 // pred_check_branch
      %162 = sbr.rel (0) target = $region73
    $region72: #{tpu_custom_call.1} parent=1 // pred_region
      %164 = dma.done [#allocation9], 64
    $region73: #{tpu_custom_call.1} parent=1 // pred_fallthru
      _
    // Predicated region
    $region74: #{tpu_custom_call.1} parent=1 // pred_check
      _
    $region75: #{tpu_custom_call.1} parent=1 // pred_check_branch
      %166 = sbr.rel (0) target = $region77
    $region76: #{tpu_custom_call.1} parent=1 // pred_region
      %168 = dma.done [#allocation12], 16384
    $region77: #{tpu_custom_call.1} parent=1 // pred_fallthru
      _
    // Predicated region
    $region78: #{tpu_custom_call.1} parent=1 // pred_check
      _
    $region79: #{tpu_custom_call.1} parent=1 // pred_check_branch
      %170 = sbr.rel (0) target = $region81
    $region80: #{tpu_custom_call.1} parent=1 // pred_region
      %172 = dma.done [#allocation12], 12288
    $region81: #{tpu_custom_call.1} parent=1 // pred_fallthru
      _
    // Predicated region
    $region82: #{tpu_custom_call.1} parent=1 // pred_check
      _
    $region83: #{tpu_custom_call.1} parent=1 // pred_check_branch
      %174 = sbr.rel (0) target = $region85
    $region84: #{tpu_custom_call.1} parent=1 // pred_region
      %176 = dma.done [#allocation15], 3072
    $region85: #{tpu_custom_call.1} parent=1 // pred_fallthru
      _
    // Predicated region
    $region86: #{tpu_custom_call.1} parent=1 // pred_check
      _
    $region87: #{tpu_custom_call.1} parent=1 // pred_check_branch
      %178 = sbr.rel (0) target = $region89
    $region88: #{tpu_custom_call.1} parent=1 // pred_region
      %180 = dma.done [#allocation15], 1024
    $region89: #{tpu_custom_call.1} parent=1 // pred_fallthru
      _
    %v181 = vld [vmem:[#allocation2] sm:$0xf]
    %v182 = vld [vmem:[#allocation2 + $0x4] sm:$0xf]
    %v183 = vld [vmem:[#allocation5] sm:$0xff]
    %v184 = vld [vmem:[#allocation5 + $0x8] sm:$0xff]
    %v185 = vld [vmem:[#allocation5 + $0x10] sm:$0xff]
    %v186 = vld [vmem:[#allocation5 + $0x18] sm:$0xff]
    %v187 = vld [vmem:[#allocation5 + $0x20] sm:$0xff]
    %v188 = vld [vmem:[#allocation5 + $0x28] sm:$0xff]
    %v189 = vld [vmem:[#allocation5 + $0x30] sm:$0xff]
    %v190 = vld [vmem:[#allocation5 + $0x38] sm:$0xff]
    %v191 = vld [vmem:[#allocation5 + $0x40] sm:$0xff]
    %v192 = vld [vmem:[#allocation5 + $0x48] sm:$0xff]
    %v193 = vld [vmem:[#allocation5 + $0x50] sm:$0xff]
    %v194 = vld [vmem:[#allocation5 + $0x58] sm:$0xff]
    %v195 = vld [vmem:[#allocation5 + $0x60] sm:$0xff]
    %v196 = vld [vmem:[#allocation5 + $0x68] sm:$0xff]
    %v197 = vld [vmem:[#allocation5 + $0x70] sm:$0xff]
    %v198 = vld [vmem:[#allocation5 + $0x78] sm:$0xff]
    %v199 = vld [vmem:[#allocation7] sm:$0x3]
    %v201 = vperm.slane %v199, 0
    %v202 = vperm.slane %v199, 1
    %v207 = vunpack.c.l.b16 %v181
    %v208 = vunpack.c.l.b16 %v182
    %v209 = vpack.c.b16 %v208, %v207
    %v227 = vunpack.c.l.b16 %v183
    %v228 = vunpack.c.h.b16 %v183
    %v229 = vunpack.c.l.b16 %v184
    %v230 = vunpack.c.h.b16 %v184
    %v231 = vunpack.c.l.b16 %v185
    %v232 = vunpack.c.h.b16 %v185
    %v233 = vunpack.c.l.b16 %v186
    %v234 = vunpack.c.h.b16 %v186
    %v235 = vunpack.c.l.b16 %v187
    %v236 = vunpack.c.h.b16 %v187
    %v237 = vunpack.c.l.b16 %v188
    %v238 = vunpack.c.h.b16 %v188
    %v239 = vunpack.c.l.b16 %v189
    %v240 = vunpack.c.h.b16 %v189
    %v241 = vunpack.c.l.b16 %v190
    %v242 = vunpack.c.h.b16 %v190
    %v243 = vunpack.c.l.b16 %v191
    %v244 = vunpack.c.h.b16 %v191
    %v245 = vunpack.c.l.b16 %v192
    %v246 = vunpack.c.h.b16 %v192
    %v247 = vunpack.c.l.b16 %v193
    %v248 = vunpack.c.h.b16 %v193
    %v249 = vunpack.c.l.b16 %v194
    %v250 = vunpack.c.h.b16 %v194
    %v251 = vunpack.c.l.b16 %v195
    %v252 = vunpack.c.h.b16 %v195
    %v253 = vunpack.c.l.b16 %v196
    %v254 = vunpack.c.h.b16 %v196
    %v255 = vunpack.c.l.b16 %v197
    %v256 = vunpack.c.h.b16 %v197
    %v257 = vunpack.c.l.b16 %v198
    %v258 = vunpack.c.h.b16 %v198
    %v259 = vpack.c.b16 %v229, %v227
    %v260 = vpack.c.b16 %v230, %v228
    %v261 = vpack.c.b16 %v233, %v231
    %v262 = vpack.c.b16 %v234, %v232
    %v263 = vpack.c.b16 %v237, %v235
    %v264 = vpack.c.b16 %v238, %v236
    %v265 = vpack.c.b16 %v241, %v239
    %v266 = vpack.c.b16 %v242, %v240
    %v267 = vpack.c.b16 %v245, %v243
    %v268 = vpack.c.b16 %v246, %v244
    %v269 = vpack.c.b16 %v249, %v247
    %v270 = vpack.c.b16 %v250, %v248
    %v271 = vpack.c.b16 %v253, %v251
    %v272 = vpack.c.b16 %v254, %v252
    %v273 = vpack.c.b16 %v257, %v255
    %v274 = vpack.c.b16 %v258, %v256
    %291 = vmatpush.bf16.msra.mxu0 %v273
    %292 = vmatpush.bf16.msra.mxu0 %v271
    %293 = vmatpush.bf16.msra.mxu0 %v269
    %294 = vmatpush.bf16.msra.mxu0 %v267
    %295 = vmatpush.bf16.msra.mxu0 %v265
    %296 = vmatpush.bf16.msra.mxu0 %v263
    %297 = vmatpush.bf16.msra.mxu0 %v261
    %298 = vmatpush.bf16.msra.mxu0 %v259
    %299 = vmatmul.bf16.gmra.mxu0 %v209
    %v300 = vpop.f32.mrf.mxu0
    %v301 = vadd.f32 %v201, %v300
    %v302 = vpop.f32.mrf.mxu0
    %v303 = vadd.f32 %v201, %v302
    %304 = vdwg.mxu0
    %305 = vmatpush.bf16.msra.mxu0 %v274
    %306 = vmatpush.bf16.msra.mxu0 %v272
    %307 = vmatpush.bf16.msra.mxu0 %v270
    %308 = vmatpush.bf16.msra.mxu0 %v268
    %309 = vmatpush.bf16.msra.mxu0 %v266
    %310 = vmatpush.bf16.msra.mxu0 %v264
    %311 = vmatpush.bf16.msra.mxu0 %v262
    %312 = vmatpush.bf16.msra.mxu0 %v260
    %313 = vmatmul.bf16.gmra.mxu0 %v209
    %v314 = vpop.f32.mrf.mxu0
    %v315 = vadd.f32 %v202, %v314
    %v316 = vpop.f32.mrf.mxu0
    %v317 = vadd.f32 %v202, %v316
    %318 = vdwg.mxu0
    %v319 = vmax.f32 %v301, 0.0
    %v320 = vmax.f32 %v315, 0.0
    %v321 = vmax.f32 %v303, 0.0
    %v322 = vmax.f32 %v317, 0.0
    %v323 = vpack.c.bf16 %v321, %v319
    %v324 = vpack.c.bf16 %v322, %v320
    %v325 = vld [vmem:[#allocation8] sm:$0xff]
    %v326 = vld [vmem:[#allocation8 + $0x8] sm:$0xff]
    %v327 = vld [vmem:[#allocation8 + $0x10] sm:$0xff]
    %v328 = vld [vmem:[#allocation8 + $0x18] sm:$0xff]
    %v329 = vld [vmem:[#allocation8 + $0x20] sm:$0xff]
    %v330 = vld [vmem:[#allocation8 + $0x28] sm:$0xff]
    %v331 = vld [vmem:[#allocation8 + $0x30] sm:$0xff]
    %v332 = vld [vmem:[#allocation8 + $0x38] sm:$0xff]
    %v333 = vld [vmem:[#allocation8 + $0x40] sm:$0xff]
    %v334 = vld [vmem:[#allocation8 + $0x48] sm:$0xff]
    %v335 = vld [vmem:[#allocation8 + $0x50] sm:$0xff]
    %v336 = vld [vmem:[#allocation8 + $0x58] sm:$0xff]
    %v337 = vld [vmem:[#allocation8 + $0x60] sm:$0xff]
    %v338 = vld [vmem:[#allocation8 + $0x68] sm:$0xff]
    %v339 = vld [vmem:[#allocation8 + $0x70] sm:$0xff]
    %v340 = vld [vmem:[#allocation8 + $0x78] sm:$0xff]
    %v341 = vld [vmem:[#allocation8 + $0x80] sm:$0xff]
    %v342 = vld [vmem:[#allocation8 + $0x88] sm:$0xff]
    %v343 = vld [vmem:[#allocation8 + $0x90] sm:$0xff]
    %v344 = vld [vmem:[#allocation8 + $0x98] sm:$0xff]
    %v345 = vld [vmem:[#allocation8 + $0xa0] sm:$0xff]
    %v346 = vld [vmem:[#allocation8 + $0xa8] sm:$0xff]
    %v347 = vld [vmem:[#allocation8 + $0xb0] sm:$0xff]
    %v348 = vld [vmem:[#allocation8 + $0xb8] sm:$0xff]
    %v349 = vld [vmem:[#allocation8 + $0xc0] sm:$0xff]
    %v350 = vld [vmem:[#allocation8 + $0xc8] sm:$0xff]
    %v351 = vld [vmem:[#allocation8 + $0xd0] sm:$0xff]
    %v352 = vld [vmem:[#allocation8 + $0xd8] sm:$0xff]
    %v353 = vld [vmem:[#allocation8 + $0xe0] sm:$0xff]
    %v354 = vld [vmem:[#allocation8 + $0xe8] sm:$0xff]
    %v355 = vld [vmem:[#allocation8 + $0xf0] sm:$0xff]
    %v356 = vld [vmem:[#allocation8 + $0xf8] sm:$0xff]
    %v357 = vld [vmem:[#allocation8 + $0x100] sm:$0xff]
    %v358 = vld [vmem:[#allocation8 + $0x108] sm:$0xff]
    %v359 = vld [vmem:[#allocation8 + $0x110] sm:$0xff]
    %v360 = vld [vmem:[#allocation8 + $0x118] sm:$0xff]
    %v361 = vld [vmem:[#allocation8 + $0x120] sm:$0xff]
    %v362 = vld [vmem:[#allocation8 + $0x128] sm:$0xff]
    %v363 = vld [vmem:[#allocation8 + $0x130] sm:$0xff]
    %v364 = vld [vmem:[#allocation8 + $0x138] sm:$0xff]
    %v365 = vld [vmem:[#allocation8 + $0x140] sm:$0xff]
    %v366 = vld [vmem:[#allocation8 + $0x148] sm:$0xff]
    %v367 = vld [vmem:[#allocation8 + $0x150] sm:$0xff]
    %v368 = vld [vmem:[#allocation8 + $0x158] sm:$0xff]
    %v369 = vld [vmem:[#allocation8 + $0x160] sm:$0xff]
    %v370 = vld [vmem:[#allocation8 + $0x168] sm:$0xff]
    %v371 = vld [vmem:[#allocation8 + $0x170] sm:$0xff]
    %v372 = vld [vmem:[#allocation8 + $0x178] sm:$0xff]
    %v373 = vld [vmem:[#allocation8 + $0x180] sm:$0xff]
    %v374 = vld [vmem:[#allocation8 + $0x188] sm:$0xff]
    %v375 = vld [vmem:[#allocation8 + $0x190] sm:$0xff]
    %v376 = vld [vmem:[#allocation8 + $0x198] sm:$0xff]
    %v377 = vld [vmem:[#allocation8 + $0x1a0] sm:$0xff]
    %v378 = vld [vmem:[#allocation8 + $0x1a8] sm:$0xff]
    %v379 = vld [vmem:[#allocation8 + $0x1b0] sm:$0xff]
    %v380 = vld [vmem:[#allocation8 + $0x1b8] sm:$0xff]
    %v381 = vld [vmem:[#allocation8 + $0x1c0] sm:$0xff]
    %v382 = vld [vmem:[#allocation8 + $0x1c8] sm:$0xff]
    %v383 = vld [vmem:[#allocation8 + $0x1d0] sm:$0xff]
    %v384 = vld [vmem:[#allocation8 + $0x1d8] sm:$0xff]
    %v385 = vld [vmem:[#allocation8 + $0x1e0] sm:$0xff]
    %v386 = vld [vmem:[#allocation8 + $0x1e8] sm:$0xff]
    %v387 = vld [vmem:[#allocation8 + $0x1f0] sm:$0xff]
    %v388 = vld [vmem:[#allocation8 + $0x1f8] sm:$0xff]
    %v389 = vld [vmem:[#allocation10] sm:$0xf]
    %v391 = vperm.slane %v389, 0
    %v392 = vperm.slane %v389, 1
    %v393 = vperm.slane %v389, 2
    %v394 = vperm.slane %v389, 3
    %v463 = vunpack.c.l.b16 %v325
    %v464 = vunpack.c.h.b16 %v325
    %v465 = vunpack.c.l.b16 %v326
    %v466 = vunpack.c.h.b16 %v326
    %v467 = vunpack.c.l.b16 %v327
    %v468 = vunpack.c.h.b16 %v327
    %v469 = vunpack.c.l.b16 %v328
    %v470 = vunpack.c.h.b16 %v328
    %v471 = vunpack.c.l.b16 %v329
    %v472 = vunpack.c.h.b16 %v329
    %v473 = vunpack.c.l.b16 %v330
    %v474 = vunpack.c.h.b16 %v330
    %v475 = vunpack.c.l.b16 %v331
    %v476 = vunpack.c.h.b16 %v331
    %v477 = vunpack.c.l.b16 %v332
    %v478 = vunpack.c.h.b16 %v332
    %v479 = vunpack.c.l.b16 %v333
    %v480 = vunpack.c.h.b16 %v333
    %v481 = vunpack.c.l.b16 %v334
    %v482 = vunpack.c.h.b16 %v334
    %v483 = vunpack.c.l.b16 %v335
    %v484 = vunpack.c.h.b16 %v335
    %v485 = vunpack.c.l.b16 %v336
    %v486 = vunpack.c.h.b16 %v336
    %v487 = vunpack.c.l.b16 %v337
    %v488 = vunpack.c.h.b16 %v337
    %v489 = vunpack.c.l.b16 %v338
    %v490 = vunpack.c.h.b16 %v338
    %v491 = vunpack.c.l.b16 %v339
    %v492 = vunpack.c.h.b16 %v339
    %v493 = vunpack.c.l.b16 %v340
    %v494 = vunpack.c.h.b16 %v340
    %v495 = vunpack.c.l.b16 %v341
    %v496 = vunpack.c.h.b16 %v341
    %v497 = vunpack.c.l.b16 %v342
    %v498 = vunpack.c.h.b16 %v342
    %v499 = vunpack.c.l.b16 %v343
    %v500 = vunpack.c.h.b16 %v343
    %v501 = vunpack.c.l.b16 %v344
    %v502 = vunpack.c.h.b16 %v344
    %v503 = vunpack.c.l.b16 %v345
    %v504 = vunpack.c.h.b16 %v345
    %v505 = vunpack.c.l.b16 %v346
    %v506 = vunpack.c.h.b16 %v346
    %v507 = vunpack.c.l.b16 %v347
    %v508 = vunpack.c.h.b16 %v347
    %v509 = vunpack.c.l.b16 %v348
    %v510 = vunpack.c.h.b16 %v348
    %v511 = vunpack.c.l.b16 %v349
    %v512 = vunpack.c.h.b16 %v349
    %v513 = vunpack.c.l.b16 %v350
    %v514 = vunpack.c.h.b16 %v350
    %v515 = vunpack.c.l.b16 %v351
    %v516 = vunpack.c.h.b16 %v351
    %v517 = vunpack.c.l.b16 %v352
    %v518 = vunpack.c.h.b16 %v352
    %v519 = vunpack.c.l.b16 %v353
    %v520 = vunpack.c.h.b16 %v353
    %v521 = vunpack.c.l.b16 %v354
    %v522 = vunpack.c.h.b16 %v354
    %v523 = vunpack.c.l.b16 %v355
    %v524 = vunpack.c.h.b16 %v355
    %v525 = vunpack.c.l.b16 %v356
    %v526 = vunpack.c.h.b16 %v356
    %v527 = vunpack.c.l.b16 %v357
    %v528 = vunpack.c.h.b16 %v357
    %v529 = vunpack.c.l.b16 %v358
    %v530 = vunpack.c.h.b16 %v358
    %v531 = vunpack.c.l.b16 %v359
    %v532 = vunpack.c.h.b16 %v359
    %v533 = vunpack.c.l.b16 %v360
    %v534 = vunpack.c.h.b16 %v360
    %v535 = vunpack.c.l.b16 %v361
    %v536 = vunpack.c.h.b16 %v361
    %v537 = vunpack.c.l.b16 %v362
    %v538 = vunpack.c.h.b16 %v362
    %v539 = vunpack.c.l.b16 %v363
    %v540 = vunpack.c.h.b16 %v363
    %v541 = vunpack.c.l.b16 %v364
    %v542 = vunpack.c.h.b16 %v364
    %v543 = vunpack.c.l.b16 %v365
    %v544 = vunpack.c.h.b16 %v365
    %v545 = vunpack.c.l.b16 %v366
    %v546 = vunpack.c.h.b16 %v366
    %v547 = vunpack.c.l.b16 %v367
    %v548 = vunpack.c.h.b16 %v367
    %v549 = vunpack.c.l.b16 %v368
    %v550 = vunpack.c.h.b16 %v368
    %v551 = vunpack.c.l.b16 %v369
    %v552 = vunpack.c.h.b16 %v369
    %v553 = vunpack.c.l.b16 %v370
    %v554 = vunpack.c.h.b16 %v370
    %v555 = vunpack.c.l.b16 %v371
    %v556 = vunpack.c.h.b16 %v371
    %v557 = vunpack.c.l.b16 %v372
    %v558 = vunpack.c.h.b16 %v372
    %v559 = vunpack.c.l.b16 %v373
    %v560 = vunpack.c.h.b16 %v373
    %v561 = vunpack.c.l.b16 %v374
    %v562 = vunpack.c.h.b16 %v374
    %v563 = vunpack.c.l.b16 %v375
    %v564 = vunpack.c.h.b16 %v375
    %v565 = vunpack.c.l.b16 %v376
    %v566 = vunpack.c.h.b16 %v376
    %v567 = vunpack.c.l.b16 %v377
    %v568 = vunpack.c.h.b16 %v377
    %v569 = vunpack.c.l.b16 %v378
    %v570 = vunpack.c.h.b16 %v378
    %v571 = vunpack.c.l.b16 %v379
    %v572 = vunpack.c.h.b16 %v379
    %v573 = vunpack.c.l.b16 %v380
    %v574 = vunpack.c.h.b16 %v380
    %v575 = vunpack.c.l.b16 %v381
    %v576 = vunpack.c.h.b16 %v381
    %v577 = vunpack.c.l.b16 %v382
    %v578 = vunpack.c.h.b16 %v382
    %v579 = vunpack.c.l.b16 %v383
    %v580 = vunpack.c.h.b16 %v383
    %v581 = vunpack.c.l.b16 %v384
    %v582 = vunpack.c.h.b16 %v384
    %v583 = vunpack.c.l.b16 %v385
    %v584 = vunpack.c.h.b16 %v385
    %v585 = vunpack.c.l.b16 %v386
    %v586 = vunpack.c.h.b16 %v386
    %v587 = vunpack.c.l.b16 %v387
    %v588 = vunpack.c.h.b16 %v387
    %v589 = vunpack.c.l.b16 %v388
    %v590 = vunpack.c.h.b16 %v388
    %v591 = vpack.c.b16 %v467, %v463
    %v592 = vpack.c.b16 %v468, %v464
    %v593 = vpack.c.b16 %v469, %v465
    %v594 = vpack.c.b16 %v470, %v466
    %v595 = vpack.c.b16 %v475, %v471
    %v596 = vpack.c.b16 %v476, %v472
    %v597 = vpack.c.b16 %v477, %v473
    %v598 = vpack.c.b16 %v478, %v474
    %v599 = vpack.c.b16 %v483, %v479
    %v600 = vpack.c.b16 %v484, %v480
    %v601 = vpack.c.b16 %v485, %v481
    %v602 = vpack.c.b16 %v486, %v482
    %v603 = vpack.c.b16 %v491, %v487
    %v604 = vpack.c.b16 %v492, %v488
    %v605 = vpack.c.b16 %v493, %v489
    %v606 = vpack.c.b16 %v494, %v490
    %v607 = vpack.c.b16 %v499, %v495
    %v608 = vpack.c.b16 %v500, %v496
    %v609 = vpack.c.b16 %v501, %v497
    %v610 = vpack.c.b16 %v502, %v498
    %v611 = vpack.c.b16 %v507, %v503
    %v612 = vpack.c.b16 %v508, %v504
    %v613 = vpack.c.b16 %v509, %v505
    %v614 = vpack.c.b16 %v510, %v506
    %v615 = vpack.c.b16 %v515, %v511
    %v616 = vpack.c.b16 %v516, %v512
    %v617 = vpack.c.b16 %v517, %v513
    %v618 = vpack.c.b16 %v518, %v514
    %v619 = vpack.c.b16 %v523, %v519
    %v620 = vpack.c.b16 %v524, %v520
    %v621 = vpack.c.b16 %v525, %v521
    %v622 = vpack.c.b16 %v526, %v522
    %v623 = vpack.c.b16 %v531, %v527
    %v624 = vpack.c.b16 %v532, %v528
    %v625 = vpack.c.b16 %v533, %v529
    %v626 = vpack.c.b16 %v534, %v530
    %v627 = vpack.c.b16 %v539, %v535
    %v628 = vpack.c.b16 %v540, %v536
    %v629 = vpack.c.b16 %v541, %v537
    %v630 = vpack.c.b16 %v542, %v538
    %v631 = vpack.c.b16 %v547, %v543
    %v632 = vpack.c.b16 %v548, %v544
    %v633 = vpack.c.b16 %v549, %v545
    %v634 = vpack.c.b16 %v550, %v546
    %v635 = vpack.c.b16 %v555, %v551
    %v636 = vpack.c.b16 %v556, %v552
    %v637 = vpack.c.b16 %v557, %v553
    %v638 = vpack.c.b16 %v558, %v554
    %v639 = vpack.c.b16 %v563, %v559
    %v640 = vpack.c.b16 %v564, %v560
    %v641 = vpack.c.b16 %v565, %v561
    %v642 = vpack.c.b16 %v566, %v562
    %v643 = vpack.c.b16 %v571, %v567
    %v644 = vpack.c.b16 %v572, %v568
    %v645 = vpack.c.b16 %v573, %v569
    %v646 = vpack.c.b16 %v574, %v570
    %v647 = vpack.c.b16 %v579, %v575
    %v648 = vpack.c.b16 %v580, %v576
    %v649 = vpack.c.b16 %v581, %v577
    %v650 = vpack.c.b16 %v582, %v578
    %v651 = vpack.c.b16 %v587, %v583
    %v652 = vpack.c.b16 %v588, %v584
    %v653 = vpack.c.b16 %v589, %v585
    %v654 = vpack.c.b16 %v590, %v586
    %719 = vmatpush.bf16.msra.mxu0 %v619
    %720 = vmatpush.bf16.msra.mxu0 %v615
    %721 = vmatpush.bf16.msra.mxu0 %v611
    %722 = vmatpush.bf16.msra.mxu0 %v607
    %723 = vmatpush.bf16.msra.mxu0 %v603
    %724 = vmatpush.bf16.msra.mxu0 %v599
    %725 = vmatpush.bf16.msra.mxu0 %v595
    %726 = vmatpush.bf16.msra.mxu0 %v591
    %727 = vmatmul.bf16.gmra.mxu0 %v323
    %v728 = vpop.f32.mrf.mxu0
    %v729 = vadd.f32 %v391, %v728
    %v730 = vpop.f32.mrf.mxu0
    %v731 = vadd.f32 %v391, %v730
    %732 = vdwg.mxu0
    %733 = vmatpush.bf16.msra.mxu0 %v651
    %734 = vmatpush.bf16.msra.mxu0 %v647
    %735 = vmatpush.bf16.msra.mxu0 %v643
    %736 = vmatpush.bf16.msra.mxu0 %v639
    %737 = vmatpush.bf16.msra.mxu0 %v635
    %738 = vmatpush.bf16.msra.mxu0 %v631
    %739 = vmatpush.bf16.msra.mxu0 %v627
    %740 = vmatpush.bf16.msra.mxu0 %v623
    %741 = vmatmul.bf16.gmra.mxu0 %v324
    %v742 = vpop.f32.mrf.mxu0
    %v743 = vadd.f32 %v729, %v742
    %v744 = vpop.f32.mrf.mxu0
    %v745 = vadd.f32 %v731, %v744
    %746 = vdwg.mxu0
    %747 = vmatpush.bf16.msra.mxu0 %v620
    %748 = vmatpush.bf16.msra.mxu0 %v616
    %749 = vmatpush.bf16.msra.mxu0 %v612
    %750 = vmatpush.bf16.msra.mxu0 %v608
    %751 = vmatpush.bf16.msra.mxu0 %v604
    %752 = vmatpush.bf16.msra.mxu0 %v600
    %753 = vmatpush.bf16.msra.mxu0 %v596
    %754 = vmatpush.bf16.msra.mxu0 %v592
    %755 = vmatmul.bf16.gmra.mxu0 %v323
    %v756 = vpop.f32.mrf.mxu0
    %v757 = vadd.f32 %v392, %v756
    %v758 = vpop.f32.mrf.mxu0
    %v759 = vadd.f32 %v392, %v758
    %760 = vdwg.mxu0
    %761 = vmatpush.bf16.msra.mxu0 %v652
    %762 = vmatpush.bf16.msra.mxu0 %v648
    %763 = vmatpush.bf16.msra.mxu0 %v644
    %764 = vmatpush.bf16.msra.mxu0 %v640
    %765 = vmatpush.bf16.msra.mxu0 %v636
    %766 = vmatpush.bf16.msra.mxu0 %v632
    %767 = vmatpush.bf16.msra.mxu0 %v628
    %768 = vmatpush.bf16.msra.mxu0 %v624
    %769 = vmatmul.bf16.gmra.mxu0 %v324
    %v770 = vpop.f32.mrf.mxu0
    %v771 = vadd.f32 %v757, %v770
    %v772 = vpop.f32.mrf.mxu0
    %v773 = vadd.f32 %v759, %v772
    %774 = vdwg.mxu0
    %775 = vmatpush.bf16.msra.mxu0 %v621
    %776 = vmatpush.bf16.msra.mxu0 %v617
    %777 = vmatpush.bf16.msra.mxu0 %v613
    %778 = vmatpush.bf16.msra.mxu0 %v609
    %779 = vmatpush.bf16.msra.mxu0 %v605
    %780 = vmatpush.bf16.msra.mxu0 %v601
    %781 = vmatpush.bf16.msra.mxu0 %v597
    %782 = vmatpush.bf16.msra.mxu0 %v593
    %783 = vmatmul.bf16.gmra.mxu0 %v323
    %v784 = vpop.f32.mrf.mxu0
    %v785 = vadd.f32 %v393, %v784
    %v786 = vpop.f32.mrf.mxu0
    %v787 = vadd.f32 %v393, %v786
    %788 = vdwg.mxu0
    %789 = vmatpush.bf16.msra.mxu0 %v653
    %790 = vmatpush.bf16.msra.mxu0 %v649
    %791 = vmatpush.bf16.msra.mxu0 %v645
    %792 = vmatpush.bf16.msra.mxu0 %v641
    %793 = vmatpush.bf16.msra.mxu0 %v637
    %794 = vmatpush.bf16.msra.mxu0 %v633
    %795 = vmatpush.bf16.msra.mxu0 %v629
    %796 = vmatpush.bf16.msra.mxu0 %v625
    %797 = vmatmul.bf16.gmra.mxu0 %v324
    %v798 = vpop.f32.mrf.mxu0
    %v799 = vadd.f32 %v785, %v798
    %v800 = vpop.f32.mrf.mxu0
    %v801 = vadd.f32 %v787, %v800
    %802 = vdwg.mxu0
    %803 = vmatpush.bf16.msra.mxu0 %v622
    %804 = vmatpush.bf16.msra.mxu0 %v618
    %805 = vmatpush.bf16.msra.mxu0 %v614
    %806 = vmatpush.bf16.msra.mxu0 %v610
    %807 = vmatpush.bf16.msra.mxu0 %v606
    %808 = vmatpush.bf16.msra.mxu0 %v602
    %809 = vmatpush.bf16.msra.mxu0 %v598
    %810 = vmatpush.bf16.msra.mxu0 %v594
    %811 = vmatmul.bf16.gmra.mxu0 %v323
    %v812 = vpop.f32.mrf.mxu0
    %v813 = vadd.f32 %v394, %v812
    %v814 = vpop.f32.mrf.mxu0
    %v815 = vadd.f32 %v394, %v814
    %816 = vdwg.mxu0
    %817 = vmatpush.bf16.msra.mxu0 %v654
    %818 = vmatpush.bf16.msra.mxu0 %v650
    %819 = vmatpush.bf16.msra.mxu0 %v646
    %820 = vmatpush.bf16.msra.mxu0 %v642
    %821 = vmatpush.bf16.msra.mxu0 %v638
    %822 = vmatpush.bf16.msra.mxu0 %v634
    %823 = vmatpush.bf16.msra.mxu0 %v630
    %824 = vmatpush.bf16.msra.mxu0 %v626
    %825 = vmatmul.bf16.gmra.mxu0 %v324
    %v826 = vpop.f32.mrf.mxu0
    %v827 = vadd.f32 %v813, %v826
    %v828 = vpop.f32.mrf.mxu0
    %v829 = vadd.f32 %v815, %v828
    %830 = vdwg.mxu0
    %v831 = vmax.f32 %v743, 0.0
    %v832 = vmax.f32 %v771, 0.0
    %v833 = vmax.f32 %v799, 0.0
    %v834 = vmax.f32 %v827, 0.0
    %v835 = vmax.f32 %v745, 0.0
    %v836 = vmax.f32 %v773, 0.0
    %v837 = vmax.f32 %v801, 0.0
    %v838 = vmax.f32 %v829, 0.0
    %v839 = vpack.c.bf16 %v835, %v831
    %v840 = vpack.c.bf16 %v836, %v832
    %v841 = vpack.c.bf16 %v837, %v833
    %v842 = vpack.c.bf16 %v838, %v834
    %v843 = vld [vmem:[#allocation11] sm:$0xff]
    %v844 = vld [vmem:[#allocation11 + $0x8] sm:$0xff]
    %v845 = vld [vmem:[#allocation11 + $0x10] sm:$0xff]
    %v846 = vld [vmem:[#allocation11 + $0x18] sm:$0xff]
    %v847 = vld [vmem:[#allocation11 + $0x20] sm:$0xff]
    %v848 = vld [vmem:[#allocation11 + $0x28] sm:$0xff]
    %v849 = vld [vmem:[#allocation11 + $0x30] sm:$0xff]
    %v850 = vld [vmem:[#allocation11 + $0x38] sm:$0xff]
    %v851 = vld [vmem:[#allocation11 + $0x40] sm:$0xff]
    %v852 = vld [vmem:[#allocation11 + $0x48] sm:$0xff]
    %v853 = vld [vmem:[#allocation11 + $0x50] sm:$0xff]
    %v854 = vld [vmem:[#allocation11 + $0x58] sm:$0xff]
    %v855 = vld [vmem:[#allocation11 + $0x60] sm:$0xff]
    %v856 = vld [vmem:[#allocation11 + $0x68] sm:$0xff]
    %v857 = vld [vmem:[#allocation11 + $0x70] sm:$0xff]
    %v858 = vld [vmem:[#allocation11 + $0x78] sm:$0xff]
    %v859 = vld [vmem:[#allocation11 + $0x80] sm:$0xff]
    %v860 = vld [vmem:[#allocation11 + $0x88] sm:$0xff]
    %v861 = vld [vmem:[#allocation11 + $0x90] sm:$0xff]
    %v862 = vld [vmem:[#allocation11 + $0x98] sm:$0xff]
    %v863 = vld [vmem:[#allocation11 + $0xa0] sm:$0xff]
    %v864 = vld [vmem:[#allocation11 + $0xa8] sm:$0xff]
    %v865 = vld [vmem:[#allocation11 + $0xb0] sm:$0xff]
    %v866 = vld [vmem:[#allocation11 + $0xb8] sm:$0xff]
    %v867 = vld [vmem:[#allocation11 + $0xc0] sm:$0xff]
    %v868 = vld [vmem:[#allocation11 + $0xc8] sm:$0xff]
    %v869 = vld [vmem:[#allocation11 + $0xd0] sm:$0xff]
    %v870 = vld [vmem:[#allocation11 + $0xd8] sm:$0xff]
    %v871 = vld [vmem:[#allocation11 + $0xe0] sm:$0xff]
    %v872 = vld [vmem:[#allocation11 + $0xe8] sm:$0xff]
    %v873 = vld [vmem:[#allocation11 + $0xf0] sm:$0xff]
    %v874 = vld [vmem:[#allocation11 + $0xf8] sm:$0xff]
    %v875 = vld [vmem:[#allocation11 + $0x100] sm:$0xff]
    %v876 = vld [vmem:[#allocation11 + $0x108] sm:$0xff]
    %v877 = vld [vmem:[#allocation11 + $0x110] sm:$0xff]
    %v878 = vld [vmem:[#allocation11 + $0x118] sm:$0xff]
    %v879 = vld [vmem:[#allocation11 + $0x120] sm:$0xff]
    %v880 = vld [vmem:[#allocation11 + $0x128] sm:$0xff]
    %v881 = vld [vmem:[#allocation11 + $0x130] sm:$0xff]
    %v882 = vld [vmem:[#allocation11 + $0x138] sm:$0xff]
    %v883 = vld [vmem:[#allocation11 + $0x140] sm:$0xff]
    %v884 = vld [vmem:[#allocation11 + $0x148] sm:$0xff]
    %v885 = vld [vmem:[#allocation11 + $0x150] sm:$0xff]
    %v886 = vld [vmem:[#allocation11 + $0x158] sm:$0xff]
    %v887 = vld [vmem:[#allocation11 + $0x160] sm:$0xff]
    %v888 = vld [vmem:[#allocation11 + $0x168] sm:$0xff]
    %v889 = vld [vmem:[#allocation11 + $0x170] sm:$0xff]
    %v890 = vld [vmem:[#allocation11 + $0x178] sm:$0xff]
    %v891 = vld [vmem:[#allocation11 + $0x180] sm:$0xff]
    %v892 = vld [vmem:[#allocation11 + $0x188] sm:$0xff]
    %v893 = vld [vmem:[#allocation11 + $0x190] sm:$0xff]
    %v894 = vld [vmem:[#allocation11 + $0x198] sm:$0xff]
    %v895 = vld [vmem:[#allocation11 + $0x1a0] sm:$0xff]
    %v896 = vld [vmem:[#allocation11 + $0x1a8] sm:$0xff]
    %v897 = vld [vmem:[#allocation11 + $0x1b0] sm:$0xff]
    %v898 = vld [vmem:[#allocation11 + $0x1b8] sm:$0xff]
    %v899 = vld [vmem:[#allocation11 + $0x1c0] sm:$0xff]
    %v900 = vld [vmem:[#allocation11 + $0x1c8] sm:$0xff]
    %v901 = vld [vmem:[#allocation11 + $0x1d0] sm:$0xff]
    %v902 = vld [vmem:[#allocation11 + $0x1d8] sm:$0xff]
    %v903 = vld [vmem:[#allocation11 + $0x1e0] sm:$0xff]
    %v904 = vld [vmem:[#allocation11 + $0x1e8] sm:$0xff]
    %v905 = vld [vmem:[#allocation11 + $0x1f0] sm:$0xff]
    %v906 = vld [vmem:[#allocation11 + $0x1f8] sm:$0xff]
    %v907 = vld [vmem:[#allocation11 + $0x200] sm:$0xff]
    %v908 = vld [vmem:[#allocation11 + $0x208] sm:$0xff]
    %v909 = vld [vmem:[#allocation11 + $0x210] sm:$0xff]
    %v910 = vld [vmem:[#allocation11 + $0x218] sm:$0xff]
    %v911 = vld [vmem:[#allocation11 + $0x220] sm:$0xff]
    %v912 = vld [vmem:[#allocation11 + $0x228] sm:$0xff]
    %v913 = vld [vmem:[#allocation11 + $0x230] sm:$0xff]
    %v914 = vld [vmem:[#allocation11 + $0x238] sm:$0xff]
    %v915 = vld [vmem:[#allocation11 + $0x240] sm:$0xff]
    %v916 = vld [vmem:[#allocation11 + $0x248] sm:$0xff]
    %v917 = vld [vmem:[#allocation11 + $0x250] sm:$0xff]
    %v918 = vld [vmem:[#allocation11 + $0x258] sm:$0xff]
    %v919 = vld [vmem:[#allocation11 + $0x260] sm:$0xff]
    %v920 = vld [vmem:[#allocation11 + $0x268] sm:$0xff]
    %v921 = vld [vmem:[#allocation11 + $0x270] sm:$0xff]
    %v922 = vld [vmem:[#allocation11 + $0x278] sm:$0xff]
    %v923 = vld [vmem:[#allocation11 + $0x280] sm:$0xff]
    %v924 = vld [vmem:[#allocation11 + $0x288] sm:$0xff]
    %v925 = vld [vmem:[#allocation11 + $0x290] sm:$0xff]
    %v926 = vld [vmem:[#allocation11 + $0x298] sm:$0xff]
    %v927 = vld [vmem:[#allocation11 + $0x2a0] sm:$0xff]
    %v928 = vld [vmem:[#allocation11 + $0x2a8] sm:$0xff]
    %v929 = vld [vmem:[#allocation11 + $0x2b0] sm:$0xff]
    %v930 = vld [vmem:[#allocation11 + $0x2b8] sm:$0xff]
    %v931 = vld [vmem:[#allocation11 + $0x2c0] sm:$0xff]
    %v932 = vld [vmem:[#allocation11 + $0x2c8] sm:$0xff]
    %v933 = vld [vmem:[#allocation11 + $0x2d0] sm:$0xff]
    %v934 = vld [vmem:[#allocation11 + $0x2d8] sm:$0xff]
    %v935 = vld [vmem:[#allocation11 + $0x2e0] sm:$0xff]
    %v936 = vld [vmem:[#allocation11 + $0x2e8] sm:$0xff]
    %v937 = vld [vmem:[#allocation11 + $0x2f0] sm:$0xff]
    %v938 = vld [vmem:[#allocation11 + $0x2f8] sm:$0xff]
    %v939 = vld [vmem:[#allocation11 + $0x300] sm:$0xff]
    %v940 = vld [vmem:[#allocation11 + $0x308] sm:$0xff]
    %v941 = vld [vmem:[#allocation11 + $0x310] sm:$0xff]
    %v942 = vld [vmem:[#allocation11 + $0x318] sm:$0xff]
    %v943 = vld [vmem:[#allocation11 + $0x320] sm:$0xff]
    %v944 = vld [vmem:[#allocation11 + $0x328] sm:$0xff]
    %v945 = vld [vmem:[#allocation11 + $0x330] sm:$0xff]
    %v946 = vld [vmem:[#allocation11 + $0x338] sm:$0xff]
    %v947 = vld [vmem:[#allocation11 + $0x340] sm:$0xff]
    %v948 = vld [vmem:[#allocation11 + $0x348] sm:$0xff]
    %v949 = vld [vmem:[#allocation11 + $0x350] sm:$0xff]
    %v950 = vld [vmem:[#allocation11 + $0x358] sm:$0xff]
    %v951 = vld [vmem:[#allocation11 + $0x360] sm:$0xff]
    %v952 = vld [vmem:[#allocation11 + $0x368] sm:$0xff]
    %v953 = vld [vmem:[#allocation11 + $0x370] sm:$0xff]
    %v954 = vld [vmem:[#allocation11 + $0x378] sm:$0xff]
    %v955 = vld [vmem:[#allocation11 + $0x380] sm:$0xff]
    %v956 = vld [vmem:[#allocation11 + $0x388] sm:$0xff]
    %v957 = vld [vmem:[#allocation11 + $0x390] sm:$0xff]
    %v958 = vld [vmem:[#allocation11 + $0x398] sm:$0xff]
    %v959 = vld [vmem:[#allocation11 + $0x3a0] sm:$0xff]
    %v960 = vld [vmem:[#allocation11 + $0x3a8] sm:$0xff]
    %v961 = vld [vmem:[#allocation11 + $0x3b0] sm:$0xff]
    %v962 = vld [vmem:[#allocation11 + $0x3b8] sm:$0xff]
    %v963 = vld [vmem:[#allocation11 + $0x3c0] sm:$0xff]
    %v964 = vld [vmem:[#allocation11 + $0x3c8] sm:$0xff]
    %v965 = vld [vmem:[#allocation11 + $0x3d0] sm:$0xff]
    %v966 = vld [vmem:[#allocation11 + $0x3d8] sm:$0xff]
    %v967 = vld [vmem:[#allocation11 + $0x3e0] sm:$0xff]
    %v968 = vld [vmem:[#allocation11 + $0x3e8] sm:$0xff]
    %v969 = vld [vmem:[#allocation11 + $0x3f0] sm:$0xff]
    %v970 = vld [vmem:[#allocation11 + $0x3f8] sm:$0xff]
    %v971 = vld [vmem:[%s6] sm:$0xf]
    %v973 = vperm.slane %v971, 0
    %v974 = vperm.slane %v971, 1
    %v975 = vperm.slane %v971, 2
    %v976 = vperm.slane %v971, 3
    %v1109 = vunpack.c.l.b16 %v843
    %v1110 = vunpack.c.h.b16 %v843
    %v1111 = vunpack.c.l.b16 %v844
    %v1112 = vunpack.c.h.b16 %v844
    %v1113 = vunpack.c.l.b16 %v845
    %v1114 = vunpack.c.h.b16 %v845
    %v1115 = vunpack.c.l.b16 %v846
    %v1116 = vunpack.c.h.b16 %v846
    %v1117 = vunpack.c.l.b16 %v847
    %v1118 = vunpack.c.h.b16 %v847
    %v1119 = vunpack.c.l.b16 %v848
    %v1120 = vunpack.c.h.b16 %v848
    %v1121 = vunpack.c.l.b16 %v849
    %v1122 = vunpack.c.h.b16 %v849
    %v1123 = vunpack.c.l.b16 %v850
    %v1124 = vunpack.c.h.b16 %v850
    %v1125 = vunpack.c.l.b16 %v851
    %v1126 = vunpack.c.h.b16 %v851
    %v1127 = vunpack.c.l.b16 %v852
    %v1128 = vunpack.c.h.b16 %v852
    %v1129 = vunpack.c.l.b16 %v853
    %v1130 = vunpack.c.h.b16 %v853
    %v1131 = vunpack.c.l.b16 %v854
    %v1132 = vunpack.c.h.b16 %v854
    %v1133 = vunpack.c.l.b16 %v855
    %v1134 = vunpack.c.h.b16 %v855
    %v1135 = vunpack.c.l.b16 %v856
    %v1136 = vunpack.c.h.b16 %v856
    %v1137 = vunpack.c.l.b16 %v857
    %v1138 = vunpack.c.h.b16 %v857
    %v1139 = vunpack.c.l.b16 %v858
    %v1140 = vunpack.c.h.b16 %v858
    %v1141 = vunpack.c.l.b16 %v859
    %v1142 = vunpack.c.h.b16 %v859
    %v1143 = vunpack.c.l.b16 %v860
    %v1144 = vunpack.c.h.b16 %v860
    %v1145 = vunpack.c.l.b16 %v861
    %v1146 = vunpack.c.h.b16 %v861
    %v1147 = vunpack.c.l.b16 %v862
    %v1148 = vunpack.c.h.b16 %v862
    %v1149 = vunpack.c.l.b16 %v863
    %v1150 = vunpack.c.h.b16 %v863
    %v1151 = vunpack.c.l.b16 %v864
    %v1152 = vunpack.c.h.b16 %v864
    %v1153 = vunpack.c.l.b16 %v865
    %v1154 = vunpack.c.h.b16 %v865
    %v1155 = vunpack.c.l.b16 %v866
    %v1156 = vunpack.c.h.b16 %v866
    %v1157 = vunpack.c.l.b16 %v867
    %v1158 = vunpack.c.h.b16 %v867
    %v1159 = vunpack.c.l.b16 %v868
    %v1160 = vunpack.c.h.b16 %v868
    %v1161 = vunpack.c.l.b16 %v869
    %v1162 = vunpack.c.h.b16 %v869
    %v1163 = vunpack.c.l.b16 %v870
    %v1164 = vunpack.c.h.b16 %v870
    %v1165 = vunpack.c.l.b16 %v871
    %v1166 = vunpack.c.h.b16 %v871
    %v1167 = vunpack.c.l.b16 %v872
    %v1168 = vunpack.c.h.b16 %v872
    %v1169 = vunpack.c.l.b16 %v873
    %v1170 = vunpack.c.h.b16 %v873
    %v1171 = vunpack.c.l.b16 %v874
    %v1172 = vunpack.c.h.b16 %v874
    %v1173 = vunpack.c.l.b16 %v875
    %v1174 = vunpack.c.h.b16 %v875
    %v1175 = vunpack.c.l.b16 %v876
    %v1176 = vunpack.c.h.b16 %v876
    %v1177 = vunpack.c.l.b16 %v877
    %v1178 = vunpack.c.h.b16 %v877
    %v1179 = vunpack.c.l.b16 %v878
    %v1180 = vunpack.c.h.b16 %v878
    %v1181 = vunpack.c.l.b16 %v879
    %v1182 = vunpack.c.h.b16 %v879
    %v1183 = vunpack.c.l.b16 %v880
    %v1184 = vunpack.c.h.b16 %v880
    %v1185 = vunpack.c.l.b16 %v881
    %v1186 = vunpack.c.h.b16 %v881
    %v1187 = vunpack.c.l.b16 %v882
    %v1188 = vunpack.c.h.b16 %v882
    %v1189 = vunpack.c.l.b16 %v883
    %v1190 = vunpack.c.h.b16 %v883
    %v1191 = vunpack.c.l.b16 %v884
    %v1192 = vunpack.c.h.b16 %v884
    %v1193 = vunpack.c.l.b16 %v885
    %v1194 = vunpack.c.h.b16 %v885
    %v1195 = vunpack.c.l.b16 %v886
    %v1196 = vunpack.c.h.b16 %v886
    %v1197 = vunpack.c.l.b16 %v887
    %v1198 = vunpack.c.h.b16 %v887
    %v1199 = vunpack.c.l.b16 %v888
    %v1200 = vunpack.c.h.b16 %v888
    %v1201 = vunpack.c.l.b16 %v889
    %v1202 = vunpack.c.h.b16 %v889
    %v1203 = vunpack.c.l.b16 %v890
    %v1204 = vunpack.c.h.b16 %v890
    %v1205 = vunpack.c.l.b16 %v891
    %v1206 = vunpack.c.h.b16 %v891
    %v1207 = vunpack.c.l.b16 %v892
    %v1208 = vunpack.c.h.b16 %v892
    %v1209 = vunpack.c.l.b16 %v893
    %v1210 = vunpack.c.h.b16 %v893
    %v1211 = vunpack.c.l.b16 %v894
    %v1212 = vunpack.c.h.b16 %v894
    %v1213 = vunpack.c.l.b16 %v895
    %v1214 = vunpack.c.h.b16 %v895
    %v1215 = vunpack.c.l.b16 %v896
    %v1216 = vunpack.c.h.b16 %v896
    %v1217 = vunpack.c.l.b16 %v897
    %v1218 = vunpack.c.h.b16 %v897
    %v1219 = vunpack.c.l.b16 %v898
    %v1220 = vunpack.c.h.b16 %v898
    %v1221 = vunpack.c.l.b16 %v899
    %v1222 = vunpack.c.h.b16 %v899
    %v1223 = vunpack.c.l.b16 %v900
    %v1224 = vunpack.c.h.b16 %v900
    %v1225 = vunpack.c.l.b16 %v901
    %v1226 = vunpack.c.h.b16 %v901
    %v1227 = vunpack.c.l.b16 %v902
    %v1228 = vunpack.c.h.b16 %v902
    %v1229 = vunpack.c.l.b16 %v903
    %v1230 = vunpack.c.h.b16 %v903
    %v1231 = vunpack.c.l.b16 %v904
    %v1232 = vunpack.c.h.b16 %v904
    %v1233 = vunpack.c.l.b16 %v905
    %v1234 = vunpack.c.h.b16 %v905
    %v1235 = vunpack.c.l.b16 %v906
    %v1236 = vunpack.c.h.b16 %v906
    %v1237 = vunpack.c.l.b16 %v907
    %v1238 = vunpack.c.h.b16 %v907
    %v1239 = vunpack.c.l.b16 %v908
    %v1240 = vunpack.c.h.b16 %v908
    %v1241 = vunpack.c.l.b16 %v909
    %v1242 = vunpack.c.h.b16 %v909
    %v1243 = vunpack.c.l.b16 %v910
    %v1244 = vunpack.c.h.b16 %v910
    %v1245 = vunpack.c.l.b16 %v911
    %v1246 = vunpack.c.h.b16 %v911
    %v1247 = vunpack.c.l.b16 %v912
    %v1248 = vunpack.c.h.b16 %v912
    %v1249 = vunpack.c.l.b16 %v913
    %v1250 = vunpack.c.h.b16 %v913
    %v1251 = vunpack.c.l.b16 %v914
    %v1252 = vunpack.c.h.b16 %v914
    %v1253 = vunpack.c.l.b16 %v915
    %v1254 = vunpack.c.h.b16 %v915
    %v1255 = vunpack.c.l.b16 %v916
    %v1256 = vunpack.c.h.b16 %v916
    %v1257 = vunpack.c.l.b16 %v917
    %v1258 = vunpack.c.h.b16 %v917
    %v1259 = vunpack.c.l.b16 %v918
    %v1260 = vunpack.c.h.b16 %v918
    %v1261 = vunpack.c.l.b16 %v919
    %v1262 = vunpack.c.h.b16 %v919
    %v1263 = vunpack.c.l.b16 %v920
    %v1264 = vunpack.c.h.b16 %v920
    %v1265 = vunpack.c.l.b16 %v921
    %v1266 = vunpack.c.h.b16 %v921
    %v1267 = vunpack.c.l.b16 %v922
    %v1268 = vunpack.c.h.b16 %v922
    %v1269 = vunpack.c.l.b16 %v923
    %v1270 = vunpack.c.h.b16 %v923
    %v1271 = vunpack.c.l.b16 %v924
    %v1272 = vunpack.c.h.b16 %v924
    %v1273 = vunpack.c.l.b16 %v925
    %v1274 = vunpack.c.h.b16 %v925
    %v1275 = vunpack.c.l.b16 %v926
    %v1276 = vunpack.c.h.b16 %v926
    %v1277 = vunpack.c.l.b16 %v927
    %v1278 = vunpack.c.h.b16 %v927
    %v1279 = vunpack.c.l.b16 %v928
    %v1280 = vunpack.c.h.b16 %v928
    %v1281 = vunpack.c.l.b16 %v929
    %v1282 = vunpack.c.h.b16 %v929
    %v1283 = vunpack.c.l.b16 %v930
    %v1284 = vunpack.c.h.b16 %v930
    %v1285 = vunpack.c.l.b16 %v931
    %v1286 = vunpack.c.h.b16 %v931
    %v1287 = vunpack.c.l.b16 %v932
    %v1288 = vunpack.c.h.b16 %v932
    %v1289 = vunpack.c.l.b16 %v933
    %v1290 = vunpack.c.h.b16 %v933
    %v1291 = vunpack.c.l.b16 %v934
    %v1292 = vunpack.c.h.b16 %v934
    %v1293 = vunpack.c.l.b16 %v935
    %v1294 = vunpack.c.h.b16 %v935
    %v1295 = vunpack.c.l.b16 %v936
    %v1296 = vunpack.c.h.b16 %v936
    %v1297 = vunpack.c.l.b16 %v937
    %v1298 = vunpack.c.h.b16 %v937
    %v1299 = vunpack.c.l.b16 %v938
    %v1300 = vunpack.c.h.b16 %v938
    %v1301 = vunpack.c.l.b16 %v939
    %v1302 = vunpack.c.h.b16 %v939
    %v1303 = vunpack.c.l.b16 %v940
    %v1304 = vunpack.c.h.b16 %v940
    %v1305 = vunpack.c.l.b16 %v941
    %v1306 = vunpack.c.h.b16 %v941
    %v1307 = vunpack.c.l.b16 %v942
    %v1308 = vunpack.c.h.b16 %v942
    %v1309 = vunpack.c.l.b16 %v943
    %v1310 = vunpack.c.h.b16 %v943
    %v1311 = vunpack.c.l.b16 %v944
    %v1312 = vunpack.c.h.b16 %v944
    %v1313 = vunpack.c.l.b16 %v945
    %v1314 = vunpack.c.h.b16 %v945
    %v1315 = vunpack.c.l.b16 %v946
    %v1316 = vunpack.c.h.b16 %v946
    %v1317 = vunpack.c.l.b16 %v947
    %v1318 = vunpack.c.h.b16 %v947
    %v1319 = vunpack.c.l.b16 %v948
    %v1320 = vunpack.c.h.b16 %v948
    %v1321 = vunpack.c.l.b16 %v949
    %v1322 = vunpack.c.h.b16 %v949
    %v1323 = vunpack.c.l.b16 %v950
    %v1324 = vunpack.c.h.b16 %v950
    %v1325 = vunpack.c.l.b16 %v951
    %v1326 = vunpack.c.h.b16 %v951
    %v1327 = vunpack.c.l.b16 %v952
    %v1328 = vunpack.c.h.b16 %v952
    %v1329 = vunpack.c.l.b16 %v953
    %v1330 = vunpack.c.h.b16 %v953
    %v1331 = vunpack.c.l.b16 %v954
    %v1332 = vunpack.c.h.b16 %v954
    %v1333 = vunpack.c.l.b16 %v955
    %v1334 = vunpack.c.h.b16 %v955
    %v1335 = vunpack.c.l.b16 %v956
    %v1336 = vunpack.c.h.b16 %v956
    %v1337 = vunpack.c.l.b16 %v957
    %v1338 = vunpack.c.h.b16 %v957
    %v1339 = vunpack.c.l.b16 %v958
    %v1340 = vunpack.c.h.b16 %v958
    %v1341 = vunpack.c.l.b16 %v959
    %v1342 = vunpack.c.h.b16 %v959
    %v1343 = vunpack.c.l.b16 %v960
    %v1344 = vunpack.c.h.b16 %v960
    %v1345 = vunpack.c.l.b16 %v961
    %v1346 = vunpack.c.h.b16 %v961
    %v1347 = vunpack.c.l.b16 %v962
    %v1348 = vunpack.c.h.b16 %v962
    %v1349 = vunpack.c.l.b16 %v963
    %v1350 = vunpack.c.h.b16 %v963
    %v1351 = vunpack.c.l.b16 %v964
    %v1352 = vunpack.c.h.b16 %v964
    %v1353 = vunpack.c.l.b16 %v965
    %v1354 = vunpack.c.h.b16 %v965
    %v1355 = vunpack.c.l.b16 %v966
    %v1356 = vunpack.c.h.b16 %v966
    %v1357 = vunpack.c.l.b16 %v967
    %v1358 = vunpack.c.h.b16 %v967
    %v1359 = vunpack.c.l.b16 %v968
    %v1360 = vunpack.c.h.b16 %v968
    %v1361 = vunpack.c.l.b16 %v969
    %v1362 = vunpack.c.h.b16 %v969
    %v1363 = vunpack.c.l.b16 %v970
    %v1364 = vunpack.c.h.b16 %v970
    %v1365 = vpack.c.b16 %v1113, %v1109
    %v1366 = vpack.c.b16 %v1114, %v1110
    %v1367 = vpack.c.b16 %v1115, %v1111
    %v1368 = vpack.c.b16 %v1116, %v1112
    %v1369 = vpack.c.b16 %v1121, %v1117
    %v1370 = vpack.c.b16 %v1122, %v1118
    %v1371 = vpack.c.b16 %v1123, %v1119
    %v1372 = vpack.c.b16 %v1124, %v1120
    %v1373 = vpack.c.b16 %v1129, %v1125
    %v1374 = vpack.c.b16 %v1130, %v1126
    %v1375 = vpack.c.b16 %v1131, %v1127
    %v1376 = vpack.c.b16 %v1132, %v1128
    %v1377 = vpack.c.b16 %v1137, %v1133
    %v1378 = vpack.c.b16 %v1138, %v1134
    %v1379 = vpack.c.b16 %v1139, %v1135
    %v1380 = vpack.c.b16 %v1140, %v1136
    %v1381 = vpack.c.b16 %v1145, %v1141
    %v1382 = vpack.c.b16 %v1146, %v1142
    %v1383 = vpack.c.b16 %v1147, %v1143
    %v1384 = vpack.c.b16 %v1148, %v1144
    %v1385 = vpack.c.b16 %v1153, %v1149
    %v1386 = vpack.c.b16 %v1154, %v1150
    %v1387 = vpack.c.b16 %v1155, %v1151
    %v1388 = vpack.c.b16 %v1156, %v1152
    %v1389 = vpack.c.b16 %v1161, %v1157
    %v1390 = vpack.c.b16 %v1162, %v1158
    %v1391 = vpack.c.b16 %v1163, %v1159
    %v1392 = vpack.c.b16 %v1164, %v1160
    %v1393 = vpack.c.b16 %v1169, %v1165
    %v1394 = vpack.c.b16 %v1170, %v1166
    %v1395 = vpack.c.b16 %v1171, %v1167
    %v1396 = vpack.c.b16 %v1172, %v1168
    %v1397 = vpack.c.b16 %v1177, %v1173
    %v1398 = vpack.c.b16 %v1178, %v1174
    %v1399 = vpack.c.b16 %v1179, %v1175
    %v1400 = vpack.c.b16 %v1180, %v1176
    %v1401 = vpack.c.b16 %v1185, %v1181
    %v1402 = vpack.c.b16 %v1186, %v1182
    %v1403 = vpack.c.b16 %v1187, %v1183
    %v1404 = vpack.c.b16 %v1188, %v1184
    %v1405 = vpack.c.b16 %v1193, %v1189
    %v1406 = vpack.c.b16 %v1194, %v1190
    %v1407 = vpack.c.b16 %v1195, %v1191
    %v1408 = vpack.c.b16 %v1196, %v1192
    %v1409 = vpack.c.b16 %v1201, %v1197
    %v1410 = vpack.c.b16 %v1202, %v1198
    %v1411 = vpack.c.b16 %v1203, %v1199
    %v1412 = vpack.c.b16 %v1204, %v1200
    %v1413 = vpack.c.b16 %v1209, %v1205
    %v1414 = vpack.c.b16 %v1210, %v1206
    %v1415 = vpack.c.b16 %v1211, %v1207
    %v1416 = vpack.c.b16 %v1212, %v1208
    %v1417 = vpack.c.b16 %v1217, %v1213
    %v1418 = vpack.c.b16 %v1218, %v1214
    %v1419 = vpack.c.b16 %v1219, %v1215
    %v1420 = vpack.c.b16 %v1220, %v1216
    %v1421 = vpack.c.b16 %v1225, %v1221
    %v1422 = vpack.c.b16 %v1226, %v1222
    %v1423 = vpack.c.b16 %v1227, %v1223
    %v1424 = vpack.c.b16 %v1228, %v1224
    %v1425 = vpack.c.b16 %v1233, %v1229
    %v1426 = vpack.c.b16 %v1234, %v1230
    %v1427 = vpack.c.b16 %v1235, %v1231
    %v1428 = vpack.c.b16 %v1236, %v1232
    %v1429 = vpack.c.b16 %v1241, %v1237
    %v1430 = vpack.c.b16 %v1242, %v1238
    %v1431 = vpack.c.b16 %v1243, %v1239
    %v1432 = vpack.c.b16 %v1244, %v1240
    %v1433 = vpack.c.b16 %v1249, %v1245
    %v1434 = vpack.c.b16 %v1250, %v1246
    %v1435 = vpack.c.b16 %v1251, %v1247
    %v1436 = vpack.c.b16 %v1252, %v1248
    %v1437 = vpack.c.b16 %v1257, %v1253
    %v1438 = vpack.c.b16 %v1258, %v1254
    %v1439 = vpack.c.b16 %v1259, %v1255
    %v1440 = vpack.c.b16 %v1260, %v1256
    %v1441 = vpack.c.b16 %v1265, %v1261
    %v1442 = vpack.c.b16 %v1266, %v1262
    %v1443 = vpack.c.b16 %v1267, %v1263
    %v1444 = vpack.c.b16 %v1268, %v1264
    %v1445 = vpack.c.b16 %v1273, %v1269
    %v1446 = vpack.c.b16 %v1274, %v1270
    %v1447 = vpack.c.b16 %v1275, %v1271
    %v1448 = vpack.c.b16 %v1276, %v1272
    %v1449 = vpack.c.b16 %v1281, %v1277
    %v1450 = vpack.c.b16 %v1282, %v1278
    %v1451 = vpack.c.b16 %v1283, %v1279
    %v1452 = vpack.c.b16 %v1284, %v1280
    %v1453 = vpack.c.b16 %v1289, %v1285
    %v1454 = vpack.c.b16 %v1290, %v1286
    %v1455 = vpack.c.b16 %v1291, %v1287
    %v1456 = vpack.c.b16 %v1292, %v1288
    %v1457 = vpack.c.b16 %v1297, %v1293
    %v1458 = vpack.c.b16 %v1298, %v1294
    %v1459 = vpack.c.b16 %v1299, %v1295
    %v1460 = vpack.c.b16 %v1300, %v1296
    %v1461 = vpack.c.b16 %v1305, %v1301
    %v1462 = vpack.c.b16 %v1306, %v1302
    %v1463 = vpack.c.b16 %v1307, %v1303
    %v1464 = vpack.c.b16 %v1308, %v1304
    %v1465 = vpack.c.b16 %v1313, %v1309
    %v1466 = vpack.c.b16 %v1314, %v1310
    %v1467 = vpack.c.b16 %v1315, %v1311
    %v1468 = vpack.c.b16 %v1316, %v1312
    %v1469 = vpack.c.b16 %v1321, %v1317
    %v1470 = vpack.c.b16 %v1322, %v1318
    %v1471 = vpack.c.b16 %v1323, %v1319
    %v1472 = vpack.c.b16 %v1324, %v1320
    %v1473 = vpack.c.b16 %v1329, %v1325
    %v1474 = vpack.c.b16 %v1330, %v1326
    %v1475 = vpack.c.b16 %v1331, %v1327
    %v1476 = vpack.c.b16 %v1332, %v1328
    %v1477 = vpack.c.b16 %v1337, %v1333
    %v1478 = vpack.c.b16 %v1338, %v1334
    %v1479 = vpack.c.b16 %v1339, %v1335
    %v1480 = vpack.c.b16 %v1340, %v1336
    %v1481 = vpack.c.b16 %v1345, %v1341
    %v1482 = vpack.c.b16 %v1346, %v1342
    %v1483 = vpack.c.b16 %v1347, %v1343
    %v1484 = vpack.c.b16 %v1348, %v1344
    %v1485 = vpack.c.b16 %v1353, %v1349
    %v1486 = vpack.c.b16 %v1354, %v1350
    %v1487 = vpack.c.b16 %v1355, %v1351
    %v1488 = vpack.c.b16 %v1356, %v1352
    %v1489 = vpack.c.b16 %v1361, %v1357
    %v1490 = vpack.c.b16 %v1362, %v1358
    %v1491 = vpack.c.b16 %v1363, %v1359
    %v1492 = vpack.c.b16 %v1364, %v1360
    %1621 = vmatpush.bf16.msra.mxu0 %v1393
    %1622 = vmatpush.bf16.msra.mxu0 %v1389
    %1623 = vmatpush.bf16.msra.mxu0 %v1385
    %1624 = vmatpush.bf16.msra.mxu0 %v1381
    %1625 = vmatpush.bf16.msra.mxu0 %v1377
    %1626 = vmatpush.bf16.msra.mxu0 %v1373
    %1627 = vmatpush.bf16.msra.mxu0 %v1369
    %1628 = vmatpush.bf16.msra.mxu0 %v1365
    %1629 = vmatmul.bf16.gmra.mxu0 %v839
    %v1630 = vpop.f32.mrf.mxu0
    %v1631 = vadd.f32 %v973, %v1630
    %v1632 = vpop.f32.mrf.mxu0
    %v1633 = vadd.f32 %v973, %v1632
    %1634 = vdwg.mxu0
    %1635 = vmatpush.bf16.msra.mxu0 %v1425
    %1636 = vmatpush.bf16.msra.mxu0 %v1421
    %1637 = vmatpush.bf16.msra.mxu0 %v1417
    %1638 = vmatpush.bf16.msra.mxu0 %v1413
    %1639 = vmatpush.bf16.msra.mxu0 %v1409
    %1640 = vmatpush.bf16.msra.mxu0 %v1405
    %1641 = vmatpush.bf16.msra.mxu0 %v1401
    %1642 = vmatpush.bf16.msra.mxu0 %v1397
    %1643 = vmatmul.bf16.gmra.mxu0 %v840
    %v1644 = vpop.f32.mrf.mxu0
    %v1645 = vadd.f32 %v1631, %v1644
    %v1646 = vpop.f32.mrf.mxu0
    %v1647 = vadd.f32 %v1633, %v1646
    %1648 = vdwg.mxu0
    %1649 = vmatpush.bf16.msra.mxu0 %v1457
    %1650 = vmatpush.bf16.msra.mxu0 %v1453
    %1651 = vmatpush.bf16.msra.mxu0 %v1449
    %1652 = vmatpush.bf16.msra.mxu0 %v1445
    %1653 = vmatpush.bf16.msra.mxu0 %v1441
    %1654 = vmatpush.bf16.msra.mxu0 %v1437
    %1655 = vmatpush.bf16.msra.mxu0 %v1433
    %1656 = vmatpush.bf16.msra.mxu0 %v1429
    %1657 = vmatmul.bf16.gmra.mxu0 %v841
    %v1658 = vpop.f32.mrf.mxu0
    %v1659 = vadd.f32 %v1645, %v1658
    %v1660 = vpop.f32.mrf.mxu0
    %v1661 = vadd.f32 %v1647, %v1660
    %1662 = vdwg.mxu0
    %1663 = vmatpush.bf16.msra.mxu0 %v1489
    %1664 = vmatpush.bf16.msra.mxu0 %v1485
    %1665 = vmatpush.bf16.msra.mxu0 %v1481
    %1666 = vmatpush.bf16.msra.mxu0 %v1477
    %1667 = vmatpush.bf16.msra.mxu0 %v1473
    %1668 = vmatpush.bf16.msra.mxu0 %v1469
    %1669 = vmatpush.bf16.msra.mxu0 %v1465
    %1670 = vmatpush.bf16.msra.mxu0 %v1461
    %1671 = vmatmul.bf16.gmra.mxu0 %v842
    %v1672 = vpop.f32.mrf.mxu0
    %v1673 = vadd.f32 %v1659, %v1672
    %v1674 = vpop.f32.mrf.mxu0
    %v1675 = vadd.f32 %v1661, %v1674
    %1676 = vdwg.mxu0
    %1677 = vmatpush.bf16.msra.mxu0 %v1394
    %1678 = vmatpush.bf16.msra.mxu0 %v1390
    %1679 = vmatpush.bf16.msra.mxu0 %v1386
    %1680 = vmatpush.bf16.msra.mxu0 %v1382
    %1681 = vmatpush.bf16.msra.mxu0 %v1378
    %1682 = vmatpush.bf16.msra.mxu0 %v1374
    %1683 = vmatpush.bf16.msra.mxu0 %v1370
    %1684 = vmatpush.bf16.msra.mxu0 %v1366
    %1685 = vmatmul.bf16.gmra.mxu0 %v839
    %v1686 = vpop.f32.mrf.mxu0
    %v1687 = vadd.f32 %v974, %v1686
    %v1688 = vpop.f32.mrf.mxu0
    %v1689 = vadd.f32 %v974, %v1688
    %1690 = vdwg.mxu0
    %1691 = vmatpush.bf16.msra.mxu0 %v1426
    %1692 = vmatpush.bf16.msra.mxu0 %v1422
    %1693 = vmatpush.bf16.msra.mxu0 %v1418
    %1694 = vmatpush.bf16.msra.mxu0 %v1414
    %1695 = vmatpush.bf16.msra.mxu0 %v1410
    %1696 = vmatpush.bf16.msra.mxu0 %v1406
    %1697 = vmatpush.bf16.msra.mxu0 %v1402
    %1698 = vmatpush.bf16.msra.mxu0 %v1398
    %1699 = vmatmul.bf16.gmra.mxu0 %v840
    %v1700 = vpop.f32.mrf.mxu0
    %v1701 = vadd.f32 %v1687, %v1700
    %v1702 = vpop.f32.mrf.mxu0
    %v1703 = vadd.f32 %v1689, %v1702
    %1704 = vdwg.mxu0
    %1705 = vmatpush.bf16.msra.mxu0 %v1458
    %1706 = vmatpush.bf16.msra.mxu0 %v1454
    %1707 = vmatpush.bf16.msra.mxu0 %v1450
    %1708 = vmatpush.bf16.msra.mxu0 %v1446
    %1709 = vmatpush.bf16.msra.mxu0 %v1442
    %1710 = vmatpush.bf16.msra.mxu0 %v1438
    %1711 = vmatpush.bf16.msra.mxu0 %v1434
    %1712 = vmatpush.bf16.msra.mxu0 %v1430
    %1713 = vmatmul.bf16.gmra.mxu0 %v841
    %v1714 = vpop.f32.mrf.mxu0
    %v1715 = vadd.f32 %v1701, %v1714
    %v1716 = vpop.f32.mrf.mxu0
    %v1717 = vadd.f32 %v1703, %v1716
    %1718 = vdwg.mxu0
    %1719 = vmatpush.bf16.msra.mxu0 %v1490
    %1720 = vmatpush.bf16.msra.mxu0 %v1486
    %1721 = vmatpush.bf16.msra.mxu0 %v1482
    %1722 = vmatpush.bf16.msra.mxu0 %v1478
    %1723 = vmatpush.bf16.msra.mxu0 %v1474
    %1724 = vmatpush.bf16.msra.mxu0 %v1470
    %1725 = vmatpush.bf16.msra.mxu0 %v1466
    %1726 = vmatpush.bf16.msra.mxu0 %v1462
    %1727 = vmatmul.bf16.gmra.mxu0 %v842
    %v1728 = vpop.f32.mrf.mxu0
    %v1729 = vadd.f32 %v1715, %v1728
    %v1730 = vpop.f32.mrf.mxu0
    %v1731 = vadd.f32 %v1717, %v1730
    %1732 = vdwg.mxu0
    %1733 = vmatpush.bf16.msra.mxu0 %v1395
    %1734 = vmatpush.bf16.msra.mxu0 %v1391
    %1735 = vmatpush.bf16.msra.mxu0 %v1387
    %1736 = vmatpush.bf16.msra.mxu0 %v1383
    %1737 = vmatpush.bf16.msra.mxu0 %v1379
    %1738 = vmatpush.bf16.msra.mxu0 %v1375
    %1739 = vmatpush.bf16.msra.mxu0 %v1371
    %1740 = vmatpush.bf16.msra.mxu0 %v1367
    %1741 = vmatmul.bf16.gmra.mxu0 %v839
    %v1742 = vpop.f32.mrf.mxu0
    %v1743 = vadd.f32 %v975, %v1742
    %v1744 = vpop.f32.mrf.mxu0
    %v1745 = vadd.f32 %v975, %v1744
    %1746 = vdwg.mxu0
    %1747 = vmatpush.bf16.msra.mxu0 %v1427
    %1748 = vmatpush.bf16.msra.mxu0 %v1423
    %1749 = vmatpush.bf16.msra.mxu0 %v1419
    %1750 = vmatpush.bf16.msra.mxu0 %v1415
    %1751 = vmatpush.bf16.msra.mxu0 %v1411
    %1752 = vmatpush.bf16.msra.mxu0 %v1407
    %1753 = vmatpush.bf16.msra.mxu0 %v1403
    %1754 = vmatpush.bf16.msra.mxu0 %v1399
    %1755 = vmatmul.bf16.gmra.mxu0 %v840
    %v1756 = vpop.f32.mrf.mxu0
    %v1757 = vadd.f32 %v1743, %v1756
    %v1758 = vpop.f32.mrf.mxu0
    %v1759 = vadd.f32 %v1745, %v1758
    %1760 = vdwg.mxu0
    %1761 = vmatpush.bf16.msra.mxu0 %v1459
    %1762 = vmatpush.bf16.msra.mxu0 %v1455
    %1763 = vmatpush.bf16.msra.mxu0 %v1451
    %1764 = vmatpush.bf16.msra.mxu0 %v1447
    %1765 = vmatpush.bf16.msra.mxu0 %v1443
    %1766 = vmatpush.bf16.msra.mxu0 %v1439
    %1767 = vmatpush.bf16.msra.mxu0 %v1435
    %1768 = vmatpush.bf16.msra.mxu0 %v1431
    %1769 = vmatmul.bf16.gmra.mxu0 %v841
    %v1770 = vpop.f32.mrf.mxu0
    %v1771 = vadd.f32 %v1757, %v1770
    %v1772 = vpop.f32.mrf.mxu0
    %v1773 = vadd.f32 %v1759, %v1772
    %1774 = vdwg.mxu0
    %1775 = vmatpush.bf16.msra.mxu0 %v1491
    %1776 = vmatpush.bf16.msra.mxu0 %v1487
    %1777 = vmatpush.bf16.msra.mxu0 %v1483
    %1778 = vmatpush.bf16.msra.mxu0 %v1479
    %1779 = vmatpush.bf16.msra.mxu0 %v1475
    %1780 = vmatpush.bf16.msra.mxu0 %v1471
    %1781 = vmatpush.bf16.msra.mxu0 %v1467
    %1782 = vmatpush.bf16.msra.mxu0 %v1463
    %1783 = vmatmul.bf16.gmra.mxu0 %v842
    %v1784 = vpop.f32.mrf.mxu0
    %v1785 = vadd.f32 %v1771, %v1784
    %v1786 = vpop.f32.mrf.mxu0
    %v1787 = vadd.f32 %v1773, %v1786
    %1788 = vdwg.mxu0
    %1789 = vmatpush.bf16.msra.mxu0 %v1396
    %1790 = vmatpush.bf16.msra.mxu0 %v1392
    %1791 = vmatpush.bf16.msra.mxu0 %v1388
    %1792 = vmatpush.bf16.msra.mxu0 %v1384
    %1793 = vmatpush.bf16.msra.mxu0 %v1380
    %1794 = vmatpush.bf16.msra.mxu0 %v1376
    %1795 = vmatpush.bf16.msra.mxu0 %v1372
    %1796 = vmatpush.bf16.msra.mxu0 %v1368
    %1797 = vmatmul.bf16.gmra.mxu0 %v839
    %v1798 = vpop.f32.mrf.mxu0
    %v1799 = vadd.f32 %v976, %v1798
    %v1800 = vpop.f32.mrf.mxu0
    %v1801 = vadd.f32 %v976, %v1800
    %1802 = vdwg.mxu0
    %1803 = vmatpush.bf16.msra.mxu0 %v1428
    %1804 = vmatpush.bf16.msra.mxu0 %v1424
    %1805 = vmatpush.bf16.msra.mxu0 %v1420
    %1806 = vmatpush.bf16.msra.mxu0 %v1416
    %1807 = vmatpush.bf16.msra.mxu0 %v1412
    %1808 = vmatpush.bf16.msra.mxu0 %v1408
    %1809 = vmatpush.bf16.msra.mxu0 %v1404
    %1810 = vmatpush.bf16.msra.mxu0 %v1400
    %1811 = vmatmul.bf16.gmra.mxu0 %v840
    %v1812 = vpop.f32.mrf.mxu0
    %v1813 = vadd.f32 %v1799, %v1812
    %v1814 = vpop.f32.mrf.mxu0
    %v1815 = vadd.f32 %v1801, %v1814
    %1816 = vdwg.mxu0
    %1817 = vmatpush.bf16.msra.mxu0 %v1460
    %1818 = vmatpush.bf16.msra.mxu0 %v1456
    %1819 = vmatpush.bf16.msra.mxu0 %v1452
    %1820 = vmatpush.bf16.msra.mxu0 %v1448
    %1821 = vmatpush.bf16.msra.mxu0 %v1444
    %1822 = vmatpush.bf16.msra.mxu0 %v1440
    %1823 = vmatpush.bf16.msra.mxu0 %v1436
    %1824 = vmatpush.bf16.msra.mxu0 %v1432
    %1825 = vmatmul.bf16.gmra.mxu0 %v841
    %v1826 = vpop.f32.mrf.mxu0
    %v1827 = vadd.f32 %v1813, %v1826
    %v1828 = vpop.f32.mrf.mxu0
    %v1829 = vadd.f32 %v1815, %v1828
    %1830 = vdwg.mxu0
    %1831 = vmatpush.bf16.msra.mxu0 %v1492
    %1832 = vmatpush.bf16.msra.mxu0 %v1488
    %1833 = vmatpush.bf16.msra.mxu0 %v1484
    %1834 = vmatpush.bf16.msra.mxu0 %v1480
    %1835 = vmatpush.bf16.msra.mxu0 %v1476
    %1836 = vmatpush.bf16.msra.mxu0 %v1472
    %1837 = vmatpush.bf16.msra.mxu0 %v1468
    %1838 = vmatpush.bf16.msra.mxu0 %v1464
    %1839 = vmatmul.bf16.gmra.mxu0 %v842
    %v1840 = vpop.f32.mrf.mxu0
    %v1841 = vadd.f32 %v1827, %v1840
    %v1842 = vpop.f32.mrf.mxu0
    %v1843 = vadd.f32 %v1829, %v1842
    %1844 = vdwg.mxu0
    %v1845 = vmax.f32 %v1673, 0.0
    %v1846 = vmax.f32 %v1729, 0.0
    %v1847 = vmax.f32 %v1785, 0.0
    %v1848 = vmax.f32 %v1841, 0.0
    %v1849 = vmax.f32 %v1675, 0.0
    %v1850 = vmax.f32 %v1731, 0.0
    %v1851 = vmax.f32 %v1787, 0.0
    %v1852 = vmax.f32 %v1843, 0.0
    %v1853 = vpack.c.bf16 %v1849, %v1845
    %v1854 = vpack.c.bf16 %v1850, %v1846
    %v1855 = vpack.c.bf16 %v1851, %v1847
    %v1856 = vpack.c.bf16 %v1852, %v1848
    %v1857 = vld [vmem:[#allocation13] sm:$0xff]
    %v1858 = vld [vmem:[#allocation13 + $0x8] sm:$0xf]
    %v1859 = vld [vmem:[#allocation13 + $0xc] sm:$0xff]
    %v1860 = vld [vmem:[#allocation13 + $0x14] sm:$0xf]
    %v1861 = vld [vmem:[#allocation13 + $0x18] sm:$0xff]
    %v1862 = vld [vmem:[#allocation13 + $0x20] sm:$0xf]
    %v1863 = vld [vmem:[#allocation13 + $0x24] sm:$0xff]
    %v1864 = vld [vmem:[#allocation13 + $0x2c] sm:$0xf]
    %v1865 = vld [vmem:[#allocation13 + $0x30] sm:$0xff]
    %v1866 = vld [vmem:[#allocation13 + $0x38] sm:$0xf]
    %v1867 = vld [vmem:[#allocation13 + $0x3c] sm:$0xff]
    %v1868 = vld [vmem:[#allocation13 + $0x44] sm:$0xf]
    %v1869 = vld [vmem:[#allocation13 + $0x48] sm:$0xff]
    %v1870 = vld [vmem:[#allocation13 + $0x50] sm:$0xf]
    %v1871 = vld [vmem:[#allocation13 + $0x54] sm:$0xff]
    %v1872 = vld [vmem:[#allocation13 + $0x5c] sm:$0xf]
    %v1873 = vld [vmem:[#allocation13 + $0x60] sm:$0xff]
    %v1874 = vld [vmem:[#allocation13 + $0x68] sm:$0xf]
    %v1875 = vld [vmem:[#allocation13 + $0x6c] sm:$0xff]
    %v1876 = vld [vmem:[#allocation13 + $0x74] sm:$0xf]
    %v1877 = vld [vmem:[#allocation13 + $0x78] sm:$0xff]
    %v1878 = vld [vmem:[#allocation13 + $0x80] sm:$0xf]
    %v1879 = vld [vmem:[#allocation13 + $0x84] sm:$0xff]
    %v1880 = vld [vmem:[#allocation13 + $0x8c] sm:$0xf]
    %v1881 = vld [vmem:[#allocation13 + $0x90] sm:$0xff]
    %v1882 = vld [vmem:[#allocation13 + $0x98] sm:$0xf]
    %v1883 = vld [vmem:[#allocation13 + $0x9c] sm:$0xff]
    %v1884 = vld [vmem:[#allocation13 + $0xa4] sm:$0xf]
    %v1885 = vld [vmem:[#allocation13 + $0xa8] sm:$0xff]
    %v1886 = vld [vmem:[#allocation13 + $0xb0] sm:$0xf]
    %v1887 = vld [vmem:[#allocation13 + $0xb4] sm:$0xff]
    %v1888 = vld [vmem:[#allocation13 + $0xbc] sm:$0xf]
    %v1889 = vld [vmem:[#allocation13 + $0xc0] sm:$0xff]
    %v1890 = vld [vmem:[#allocation13 + $0xc8] sm:$0xf]
    %v1891 = vld [vmem:[#allocation13 + $0xcc] sm:$0xff]
    %v1892 = vld [vmem:[#allocation13 + $0xd4] sm:$0xf]
    %v1893 = vld [vmem:[#allocation13 + $0xd8] sm:$0xff]
    %v1894 = vld [vmem:[#allocation13 + $0xe0] sm:$0xf]
    %v1895 = vld [vmem:[#allocation13 + $0xe4] sm:$0xff]
    %v1896 = vld [vmem:[#allocation13 + $0xec] sm:$0xf]
    %v1897 = vld [vmem:[#allocation13 + $0xf0] sm:$0xff]
    %v1898 = vld [vmem:[#allocation13 + $0xf8] sm:$0xf]
    %v1899 = vld [vmem:[#allocation13 + $0xfc] sm:$0xff]
    %v1900 = vld [vmem:[#allocation13 + $0x104] sm:$0xf]
    %v1901 = vld [vmem:[#allocation13 + $0x108] sm:$0xff]
    %v1902 = vld [vmem:[#allocation13 + $0x110] sm:$0xf]
    %v1903 = vld [vmem:[#allocation13 + $0x114] sm:$0xff]
    %v1904 = vld [vmem:[#allocation13 + $0x11c] sm:$0xf]
    %v1905 = vld [vmem:[#allocation13 + $0x120] sm:$0xff]
    %v1906 = vld [vmem:[#allocation13 + $0x128] sm:$0xf]
    %v1907 = vld [vmem:[#allocation13 + $0x12c] sm:$0xff]
    %v1908 = vld [vmem:[#allocation13 + $0x134] sm:$0xf]
    %v1909 = vld [vmem:[#allocation13 + $0x138] sm:$0xff]
    %v1910 = vld [vmem:[#allocation13 + $0x140] sm:$0xf]
    %v1911 = vld [vmem:[#allocation13 + $0x144] sm:$0xff]
    %v1912 = vld [vmem:[#allocation13 + $0x14c] sm:$0xf]
    %v1913 = vld [vmem:[#allocation13 + $0x150] sm:$0xff]
    %v1914 = vld [vmem:[#allocation13 + $0x158] sm:$0xf]
    %v1915 = vld [vmem:[#allocation13 + $0x15c] sm:$0xff]
    %v1916 = vld [vmem:[#allocation13 + $0x164] sm:$0xf]
    %v1917 = vld [vmem:[#allocation13 + $0x168] sm:$0xff]
    %v1918 = vld [vmem:[#allocation13 + $0x170] sm:$0xf]
    %v1919 = vld [vmem:[#allocation13 + $0x174] sm:$0xff]
    %v1920 = vld [vmem:[#allocation13 + $0x17c] sm:$0xf]
    %v1921 = vld [vmem:[#allocation13 + $0x180] sm:$0xff]
    %v1922 = vld [vmem:[#allocation13 + $0x188] sm:$0xf]
    %v1923 = vld [vmem:[#allocation13 + $0x18c] sm:$0xff]
    %v1924 = vld [vmem:[#allocation13 + $0x194] sm:$0xf]
    %v1925 = vld [vmem:[#allocation13 + $0x198] sm:$0xff]
    %v1926 = vld [vmem:[#allocation13 + $0x1a0] sm:$0xf]
    %v1927 = vld [vmem:[#allocation13 + $0x1a4] sm:$0xff]
    %v1928 = vld [vmem:[#allocation13 + $0x1ac] sm:$0xf]
    %v1929 = vld [vmem:[#allocation13 + $0x1b0] sm:$0xff]
    %v1930 = vld [vmem:[#allocation13 + $0x1b8] sm:$0xf]
    %v1931 = vld [vmem:[#allocation13 + $0x1bc] sm:$0xff]
    %v1932 = vld [vmem:[#allocation13 + $0x1c4] sm:$0xf]
    %v1933 = vld [vmem:[#allocation13 + $0x1c8] sm:$0xff]
    %v1934 = vld [vmem:[#allocation13 + $0x1d0] sm:$0xf]
    %v1935 = vld [vmem:[#allocation13 + $0x1d4] sm:$0xff]
    %v1936 = vld [vmem:[#allocation13 + $0x1dc] sm:$0xf]
    %v1937 = vld [vmem:[#allocation13 + $0x1e0] sm:$0xff]
    %v1938 = vld [vmem:[#allocation13 + $0x1e8] sm:$0xf]
    %v1939 = vld [vmem:[#allocation13 + $0x1ec] sm:$0xff]
    %v1940 = vld [vmem:[#allocation13 + $0x1f4] sm:$0xf]
    %v1941 = vld [vmem:[#allocation13 + $0x1f8] sm:$0xff]
    %v1942 = vld [vmem:[#allocation13 + $0x200] sm:$0xf]
    %v1943 = vld [vmem:[#allocation13 + $0x204] sm:$0xff]
    %v1944 = vld [vmem:[#allocation13 + $0x20c] sm:$0xf]
    %v1945 = vld [vmem:[#allocation13 + $0x210] sm:$0xff]
    %v1946 = vld [vmem:[#allocation13 + $0x218] sm:$0xf]
    %v1947 = vld [vmem:[#allocation13 + $0x21c] sm:$0xff]
    %v1948 = vld [vmem:[#allocation13 + $0x224] sm:$0xf]
    %v1949 = vld [vmem:[#allocation13 + $0x228] sm:$0xff]
    %v1950 = vld [vmem:[#allocation13 + $0x230] sm:$0xf]
    %v1951 = vld [vmem:[#allocation13 + $0x234] sm:$0xff]
    %v1952 = vld [vmem:[#allocation13 + $0x23c] sm:$0xf]
    %v1953 = vld [vmem:[#allocation13 + $0x240] sm:$0xff]
    %v1954 = vld [vmem:[#allocation13 + $0x248] sm:$0xf]
    %v1955 = vld [vmem:[#allocation13 + $0x24c] sm:$0xff]
    %v1956 = vld [vmem:[#allocation13 + $0x254] sm:$0xf]
    %v1957 = vld [vmem:[#allocation13 + $0x258] sm:$0xff]
    %v1958 = vld [vmem:[#allocation13 + $0x260] sm:$0xf]
    %v1959 = vld [vmem:[#allocation13 + $0x264] sm:$0xff]
    %v1960 = vld [vmem:[#allocation13 + $0x26c] sm:$0xf]
    %v1961 = vld [vmem:[#allocation13 + $0x270] sm:$0xff]
    %v1962 = vld [vmem:[#allocation13 + $0x278] sm:$0xf]
    %v1963 = vld [vmem:[#allocation13 + $0x27c] sm:$0xff]
    %v1964 = vld [vmem:[#allocation13 + $0x284] sm:$0xf]
    %v1965 = vld [vmem:[#allocation13 + $0x288] sm:$0xff]
    %v1966 = vld [vmem:[#allocation13 + $0x290] sm:$0xf]
    %v1967 = vld [vmem:[#allocation13 + $0x294] sm:$0xff]
    %v1968 = vld [vmem:[#allocation13 + $0x29c] sm:$0xf]
    %v1969 = vld [vmem:[#allocation13 + $0x2a0] sm:$0xff]
    %v1970 = vld [vmem:[#allocation13 + $0x2a8] sm:$0xf]
    %v1971 = vld [vmem:[#allocation13 + $0x2ac] sm:$0xff]
    %v1972 = vld [vmem:[#allocation13 + $0x2b4] sm:$0xf]
    %v1973 = vld [vmem:[#allocation13 + $0x2b8] sm:$0xff]
    %v1974 = vld [vmem:[#allocation13 + $0x2c0] sm:$0xf]
    %v1975 = vld [vmem:[#allocation13 + $0x2c4] sm:$0xff]
    %v1976 = vld [vmem:[#allocation13 + $0x2cc] sm:$0xf]
    %v1977 = vld [vmem:[#allocation13 + $0x2d0] sm:$0xff]
    %v1978 = vld [vmem:[#allocation13 + $0x2d8] sm:$0xf]
    %v1979 = vld [vmem:[#allocation13 + $0x2dc] sm:$0xff]
    %v1980 = vld [vmem:[#allocation13 + $0x2e4] sm:$0xf]
    %v1981 = vld [vmem:[#allocation13 + $0x2e8] sm:$0xff]
    %v1982 = vld [vmem:[#allocation13 + $0x2f0] sm:$0xf]
    %v1983 = vld [vmem:[#allocation13 + $0x2f4] sm:$0xff]
    %v1984 = vld [vmem:[#allocation13 + $0x2fc] sm:$0xf]
    %v1985 = vld [vmem:[%s8] sm:$0x7]
    %v1987 = vperm.slane %v1985, 0
    %v1988 = vperm.slane %v1985, 1
    %v1989 = vperm.slane %v1985, 2
    %v2121 = vunpack.c.l.b16 %v1857
    %v2122 = vunpack.c.h.b16 %v1857
    %v2123 = vunpack.c.l.b16 %v1858
    %v2124 = vunpack.c.l.b16 %v1859
    %v2125 = vunpack.c.h.b16 %v1859
    %v2126 = vunpack.c.l.b16 %v1860
    %v2127 = vunpack.c.l.b16 %v1861
    %v2128 = vunpack.c.h.b16 %v1861
    %v2129 = vunpack.c.l.b16 %v1862
    %v2130 = vunpack.c.l.b16 %v1863
    %v2131 = vunpack.c.h.b16 %v1863
    %v2132 = vunpack.c.l.b16 %v1864
    %v2133 = vunpack.c.l.b16 %v1865
    %v2134 = vunpack.c.h.b16 %v1865
    %v2135 = vunpack.c.l.b16 %v1866
    %v2136 = vunpack.c.l.b16 %v1867
    %v2137 = vunpack.c.h.b16 %v1867
    %v2138 = vunpack.c.l.b16 %v1868
    %v2139 = vunpack.c.l.b16 %v1869
    %v2140 = vunpack.c.h.b16 %v1869
    %v2141 = vunpack.c.l.b16 %v1870
    %v2142 = vunpack.c.l.b16 %v1871
    %v2143 = vunpack.c.h.b16 %v1871
    %v2144 = vunpack.c.l.b16 %v1872
    %v2145 = vunpack.c.l.b16 %v1873
    %v2146 = vunpack.c.h.b16 %v1873
    %v2147 = vunpack.c.l.b16 %v1874
    %v2148 = vunpack.c.l.b16 %v1875
    %v2149 = vunpack.c.h.b16 %v1875
    %v2150 = vunpack.c.l.b16 %v1876
    %v2151 = vunpack.c.l.b16 %v1877
    %v2152 = vunpack.c.h.b16 %v1877
    %v2153 = vunpack.c.l.b16 %v1878
    %v2154 = vunpack.c.l.b16 %v1879
    %v2155 = vunpack.c.h.b16 %v1879
    %v2156 = vunpack.c.l.b16 %v1880
    %v2157 = vunpack.c.l.b16 %v1881
    %v2158 = vunpack.c.h.b16 %v1881
    %v2159 = vunpack.c.l.b16 %v1882
    %v2160 = vunpack.c.l.b16 %v1883
    %v2161 = vunpack.c.h.b16 %v1883
    %v2162 = vunpack.c.l.b16 %v1884
    %v2163 = vunpack.c.l.b16 %v1885
    %v2164 = vunpack.c.h.b16 %v1885
    %v2165 = vunpack.c.l.b16 %v1886
    %v2166 = vunpack.c.l.b16 %v1887
    %v2167 = vunpack.c.h.b16 %v1887
    %v2168 = vunpack.c.l.b16 %v1888
    %v2169 = vunpack.c.l.b16 %v1889
    %v2170 = vunpack.c.h.b16 %v1889
    %v2171 = vunpack.c.l.b16 %v1890
    %v2172 = vunpack.c.l.b16 %v1891
    %v2173 = vunpack.c.h.b16 %v1891
    %v2174 = vunpack.c.l.b16 %v1892
    %v2175 = vunpack.c.l.b16 %v1893
    %v2176 = vunpack.c.h.b16 %v1893
    %v2177 = vunpack.c.l.b16 %v1894
    %v2178 = vunpack.c.l.b16 %v1895
    %v2179 = vunpack.c.h.b16 %v1895
    %v2180 = vunpack.c.l.b16 %v1896
    %v2181 = vunpack.c.l.b16 %v1897
    %v2182 = vunpack.c.h.b16 %v1897
    %v2183 = vunpack.c.l.b16 %v1898
    %v2184 = vunpack.c.l.b16 %v1899
    %v2185 = vunpack.c.h.b16 %v1899
    %v2186 = vunpack.c.l.b16 %v1900
    %v2187 = vunpack.c.l.b16 %v1901
    %v2188 = vunpack.c.h.b16 %v1901
    %v2189 = vunpack.c.l.b16 %v1902
    %v2190 = vunpack.c.l.b16 %v1903
    %v2191 = vunpack.c.h.b16 %v1903
    %v2192 = vunpack.c.l.b16 %v1904
    %v2193 = vunpack.c.l.b16 %v1905
    %v2194 = vunpack.c.h.b16 %v1905
    %v2195 = vunpack.c.l.b16 %v1906
    %v2196 = vunpack.c.l.b16 %v1907
    %v2197 = vunpack.c.h.b16 %v1907
    %v2198 = vunpack.c.l.b16 %v1908
    %v2199 = vunpack.c.l.b16 %v1909
    %v2200 = vunpack.c.h.b16 %v1909
    %v2201 = vunpack.c.l.b16 %v1910
    %v2202 = vunpack.c.l.b16 %v1911
    %v2203 = vunpack.c.h.b16 %v1911
    %v2204 = vunpack.c.l.b16 %v1912
    %v2205 = vunpack.c.l.b16 %v1913
    %v2206 = vunpack.c.h.b16 %v1913
    %v2207 = vunpack.c.l.b16 %v1914
    %v2208 = vunpack.c.l.b16 %v1915
    %v2209 = vunpack.c.h.b16 %v1915
    %v2210 = vunpack.c.l.b16 %v1916
    %v2211 = vunpack.c.l.b16 %v1917
    %v2212 = vunpack.c.h.b16 %v1917
    %v2213 = vunpack.c.l.b16 %v1918
    %v2214 = vunpack.c.l.b16 %v1919
    %v2215 = vunpack.c.h.b16 %v1919
    %v2216 = vunpack.c.l.b16 %v1920
    %v2217 = vunpack.c.l.b16 %v1921
    %v2218 = vunpack.c.h.b16 %v1921
    %v2219 = vunpack.c.l.b16 %v1922
    %v2220 = vunpack.c.l.b16 %v1923
    %v2221 = vunpack.c.h.b16 %v1923
    %v2222 = vunpack.c.l.b16 %v1924
    %v2223 = vunpack.c.l.b16 %v1925
    %v2224 = vunpack.c.h.b16 %v1925
    %v2225 = vunpack.c.l.b16 %v1926
    %v2226 = vunpack.c.l.b16 %v1927
    %v2227 = vunpack.c.h.b16 %v1927
    %v2228 = vunpack.c.l.b16 %v1928
    %v2229 = vunpack.c.l.b16 %v1929
    %v2230 = vunpack.c.h.b16 %v1929
    %v2231 = vunpack.c.l.b16 %v1930
    %v2232 = vunpack.c.l.b16 %v1931
    %v2233 = vunpack.c.h.b16 %v1931
    %v2234 = vunpack.c.l.b16 %v1932
    %v2235 = vunpack.c.l.b16 %v1933
    %v2236 = vunpack.c.h.b16 %v1933
    %v2237 = vunpack.c.l.b16 %v1934
    %v2238 = vunpack.c.l.b16 %v1935
    %v2239 = vunpack.c.h.b16 %v1935
    %v2240 = vunpack.c.l.b16 %v1936
    %v2241 = vunpack.c.l.b16 %v1937
    %v2242 = vunpack.c.h.b16 %v1937
    %v2243 = vunpack.c.l.b16 %v1938
    %v2244 = vunpack.c.l.b16 %v1939
    %v2245 = vunpack.c.h.b16 %v1939
    %v2246 = vunpack.c.l.b16 %v1940
    %v2247 = vunpack.c.l.b16 %v1941
    %v2248 = vunpack.c.h.b16 %v1941
    %v2249 = vunpack.c.l.b16 %v1942
    %v2250 = vunpack.c.l.b16 %v1943
    %v2251 = vunpack.c.h.b16 %v1943
    %v2252 = vunpack.c.l.b16 %v1944
    %v2253 = vunpack.c.l.b16 %v1945
    %v2254 = vunpack.c.h.b16 %v1945
    %v2255 = vunpack.c.l.b16 %v1946
    %v2256 = vunpack.c.l.b16 %v1947
    %v2257 = vunpack.c.h.b16 %v1947
    %v2258 = vunpack.c.l.b16 %v1948
    %v2259 = vunpack.c.l.b16 %v1949
    %v2260 = vunpack.c.h.b16 %v1949
    %v2261 = vunpack.c.l.b16 %v1950
    %v2262 = vunpack.c.l.b16 %v1951
    %v2263 = vunpack.c.h.b16 %v1951
    %v2264 = vunpack.c.l.b16 %v1952
    %v2265 = vunpack.c.l.b16 %v1953
    %v2266 = vunpack.c.h.b16 %v1953
    %v2267 = vunpack.c.l.b16 %v1954
    %v2268 = vunpack.c.l.b16 %v1955
    %v2269 = vunpack.c.h.b16 %v1955
    %v2270 = vunpack.c.l.b16 %v1956
    %v2271 = vunpack.c.l.b16 %v1957
    %v2272 = vunpack.c.h.b16 %v1957
    %v2273 = vunpack.c.l.b16 %v1958
    %v2274 = vunpack.c.l.b16 %v1959
    %v2275 = vunpack.c.h.b16 %v1959
    %v2276 = vunpack.c.l.b16 %v1960
    %v2277 = vunpack.c.l.b16 %v1961
    %v2278 = vunpack.c.h.b16 %v1961
    %v2279 = vunpack.c.l.b16 %v1962
    %v2280 = vunpack.c.l.b16 %v1963
    %v2281 = vunpack.c.h.b16 %v1963
    %v2282 = vunpack.c.l.b16 %v1964
    %v2283 = vunpack.c.l.b16 %v1965
    %v2284 = vunpack.c.h.b16 %v1965
    %v2285 = vunpack.c.l.b16 %v1966
    %v2286 = vunpack.c.l.b16 %v1967
    %v2287 = vunpack.c.h.b16 %v1967
    %v2288 = vunpack.c.l.b16 %v1968
    %v2289 = vunpack.c.l.b16 %v1969
    %v2290 = vunpack.c.h.b16 %v1969
    %v2291 = vunpack.c.l.b16 %v1970
    %v2292 = vunpack.c.l.b16 %v1971
    %v2293 = vunpack.c.h.b16 %v1971
    %v2294 = vunpack.c.l.b16 %v1972
    %v2295 = vunpack.c.l.b16 %v1973
    %v2296 = vunpack.c.h.b16 %v1973
    %v2297 = vunpack.c.l.b16 %v1974
    %v2298 = vunpack.c.l.b16 %v1975
    %v2299 = vunpack.c.h.b16 %v1975
    %v2300 = vunpack.c.l.b16 %v1976
    %v2301 = vunpack.c.l.b16 %v1977
    %v2302 = vunpack.c.h.b16 %v1977
    %v2303 = vunpack.c.l.b16 %v1978
    %v2304 = vunpack.c.l.b16 %v1979
    %v2305 = vunpack.c.h.b16 %v1979
    %v2306 = vunpack.c.l.b16 %v1980
    %v2307 = vunpack.c.l.b16 %v1981
    %v2308 = vunpack.c.h.b16 %v1981
    %v2309 = vunpack.c.l.b16 %v1982
    %v2310 = vunpack.c.l.b16 %v1983
    %v2311 = vunpack.c.h.b16 %v1983
    %v2312 = vunpack.c.l.b16 %v1984
    %v2313 = vpack.c.b16 %v2124, %v2121
    %v2314 = vpack.c.b16 %v2125, %v2122
    %v2315 = vpack.c.b16 %v2126, %v2123
    %v2316 = vpack.c.b16 %v2130, %v2127
    %v2317 = vpack.c.b16 %v2131, %v2128
    %v2318 = vpack.c.b16 %v2132, %v2129
    %v2319 = vpack.c.b16 %v2136, %v2133
    %v2320 = vpack.c.b16 %v2137, %v2134
    %v2321 = vpack.c.b16 %v2138, %v2135
    %v2322 = vpack.c.b16 %v2142, %v2139
    %v2323 = vpack.c.b16 %v2143, %v2140
    %v2324 = vpack.c.b16 %v2144, %v2141
    %v2325 = vpack.c.b16 %v2148, %v2145
    %v2326 = vpack.c.b16 %v2149, %v2146
    %v2327 = vpack.c.b16 %v2150, %v2147
    %v2328 = vpack.c.b16 %v2154, %v2151
    %v2329 = vpack.c.b16 %v2155, %v2152
    %v2330 = vpack.c.b16 %v2156, %v2153
    %v2331 = vpack.c.b16 %v2160, %v2157
    %v2332 = vpack.c.b16 %v2161, %v2158
    %v2333 = vpack.c.b16 %v2162, %v2159
    %v2334 = vpack.c.b16 %v2166, %v2163
    %v2335 = vpack.c.b16 %v2167, %v2164
    %v2336 = vpack.c.b16 %v2168, %v2165
    %v2337 = vpack.c.b16 %v2172, %v2169
    %v2338 = vpack.c.b16 %v2173, %v2170
    %v2339 = vpack.c.b16 %v2174, %v2171
    %v2340 = vpack.c.b16 %v2178, %v2175
    %v2341 = vpack.c.b16 %v2179, %v2176
    %v2342 = vpack.c.b16 %v2180, %v2177
    %v2343 = vpack.c.b16 %v2184, %v2181
    %v2344 = vpack.c.b16 %v2185, %v2182
    %v2345 = vpack.c.b16 %v2186, %v2183
    %v2346 = vpack.c.b16 %v2190, %v2187
    %v2347 = vpack.c.b16 %v2191, %v2188
    %v2348 = vpack.c.b16 %v2192, %v2189
    %v2349 = vpack.c.b16 %v2196, %v2193
    %v2350 = vpack.c.b16 %v2197, %v2194
    %v2351 = vpack.c.b16 %v2198, %v2195
    %v2352 = vpack.c.b16 %v2202, %v2199
    %v2353 = vpack.c.b16 %v2203, %v2200
    %v2354 = vpack.c.b16 %v2204, %v2201
    %v2355 = vpack.c.b16 %v2208, %v2205
    %v2356 = vpack.c.b16 %v2209, %v2206
    %v2357 = vpack.c.b16 %v2210, %v2207
    %v2358 = vpack.c.b16 %v2214, %v2211
    %v2359 = vpack.c.b16 %v2215, %v2212
    %v2360 = vpack.c.b16 %v2216, %v2213
    %v2361 = vpack.c.b16 %v2220, %v2217
    %v2362 = vpack.c.b16 %v2221, %v2218
    %v2363 = vpack.c.b16 %v2222, %v2219
    %v2364 = vpack.c.b16 %v2226, %v2223
    %v2365 = vpack.c.b16 %v2227, %v2224
    %v2366 = vpack.c.b16 %v2228, %v2225
    %v2367 = vpack.c.b16 %v2232, %v2229
    %v2368 = vpack.c.b16 %v2233, %v2230
    %v2369 = vpack.c.b16 %v2234, %v2231
    %v2370 = vpack.c.b16 %v2238, %v2235
    %v2371 = vpack.c.b16 %v2239, %v2236
    %v2372 = vpack.c.b16 %v2240, %v2237
    %v2373 = vpack.c.b16 %v2244, %v2241
    %v2374 = vpack.c.b16 %v2245, %v2242
    %v2375 = vpack.c.b16 %v2246, %v2243
    %v2376 = vpack.c.b16 %v2250, %v2247
    %v2377 = vpack.c.b16 %v2251, %v2248
    %v2378 = vpack.c.b16 %v2252, %v2249
    %v2379 = vpack.c.b16 %v2256, %v2253
    %v2380 = vpack.c.b16 %v2257, %v2254
    %v2381 = vpack.c.b16 %v2258, %v2255
    %v2382 = vpack.c.b16 %v2262, %v2259
    %v2383 = vpack.c.b16 %v2263, %v2260
    %v2384 = vpack.c.b16 %v2264, %v2261
    %v2385 = vpack.c.b16 %v2268, %v2265
    %v2386 = vpack.c.b16 %v2269, %v2266
    %v2387 = vpack.c.b16 %v2270, %v2267
    %v2388 = vpack.c.b16 %v2274, %v2271
    %v2389 = vpack.c.b16 %v2275, %v2272
    %v2390 = vpack.c.b16 %v2276, %v2273
    %v2391 = vpack.c.b16 %v2280, %v2277
    %v2392 = vpack.c.b16 %v2281, %v2278
    %v2393 = vpack.c.b16 %v2282, %v2279
    %v2394 = vpack.c.b16 %v2286, %v2283
    %v2395 = vpack.c.b16 %v2287, %v2284
    %v2396 = vpack.c.b16 %v2288, %v2285
    %v2397 = vpack.c.b16 %v2292, %v2289
    %v2398 = vpack.c.b16 %v2293, %v2290
    %v2399 = vpack.c.b16 %v2294, %v2291
    %v2400 = vpack.c.b16 %v2298, %v2295
    %v2401 = vpack.c.b16 %v2299, %v2296
    %v2402 = vpack.c.b16 %v2300, %v2297
    %v2403 = vpack.c.b16 %v2304, %v2301
    %v2404 = vpack.c.b16 %v2305, %v2302
    %v2405 = vpack.c.b16 %v2306, %v2303
    %v2406 = vpack.c.b16 %v2310, %v2307
    %v2407 = vpack.c.b16 %v2311, %v2308
    %v2408 = vpack.c.b16 %v2312, %v2309
    %2505 = vmatpush.bf16.msra.mxu0 %v2334
    %2506 = vmatpush.bf16.msra.mxu0 %v2331
    %2507 = vmatpush.bf16.msra.mxu0 %v2328
    %2508 = vmatpush.bf16.msra.mxu0 %v2325
    %2509 = vmatpush.bf16.msra.mxu0 %v2322
    %2510 = vmatpush.bf16.msra.mxu0 %v2319
    %2511 = vmatpush.bf16.msra.mxu0 %v2316
    %2512 = vmatpush.bf16.msra.mxu0 %v2313
    %2513 = vmatmul.bf16.gmra.mxu0 %v1853
    %v2514 = vpop.f32.mrf.mxu0
    %v2515 = vadd.f32 %v1987, %v2514
    %v2516 = vpop.f32.mrf.mxu0
    %v2517 = vadd.f32 %v1987, %v2516
    %2518 = vdwg.mxu0
    %2519 = vmatpush.bf16.msra.mxu0 %v2358
    %2520 = vmatpush.bf16.msra.mxu0 %v2355
    %2521 = vmatpush.bf16.msra.mxu0 %v2352
    %2522 = vmatpush.bf16.msra.mxu0 %v2349
    %2523 = vmatpush.bf16.msra.mxu0 %v2346
    %2524 = vmatpush.bf16.msra.mxu0 %v2343
    %2525 = vmatpush.bf16.msra.mxu0 %v2340
    %2526 = vmatpush.bf16.msra.mxu0 %v2337
    %2527 = vmatmul.bf16.gmra.mxu0 %v1854
    %v2528 = vpop.f32.mrf.mxu0
    %v2529 = vadd.f32 %v2515, %v2528
    %v2530 = vpop.f32.mrf.mxu0
    %v2531 = vadd.f32 %v2517, %v2530
    %2532 = vdwg.mxu0
    %2533 = vmatpush.bf16.msra.mxu0 %v2382
    %2534 = vmatpush.bf16.msra.mxu0 %v2379
    %2535 = vmatpush.bf16.msra.mxu0 %v2376
    %2536 = vmatpush.bf16.msra.mxu0 %v2373
    %2537 = vmatpush.bf16.msra.mxu0 %v2370
    %2538 = vmatpush.bf16.msra.mxu0 %v2367
    %2539 = vmatpush.bf16.msra.mxu0 %v2364
    %2540 = vmatpush.bf16.msra.mxu0 %v2361
    %2541 = vmatmul.bf16.gmra.mxu0 %v1855
    %v2542 = vpop.f32.mrf.mxu0
    %v2543 = vadd.f32 %v2529, %v2542
    %v2544 = vpop.f32.mrf.mxu0
    %v2545 = vadd.f32 %v2531, %v2544
    %2546 = vdwg.mxu0
    %2547 = vmatpush.bf16.msra.mxu0 %v2406
    %2548 = vmatpush.bf16.msra.mxu0 %v2403
    %2549 = vmatpush.bf16.msra.mxu0 %v2400
    %2550 = vmatpush.bf16.msra.mxu0 %v2397
    %2551 = vmatpush.bf16.msra.mxu0 %v2394
    %2552 = vmatpush.bf16.msra.mxu0 %v2391
    %2553 = vmatpush.bf16.msra.mxu0 %v2388
    %2554 = vmatpush.bf16.msra.mxu0 %v2385
    %2555 = vmatmul.bf16.gmra.mxu0 %v1856
    %v2556 = vpop.f32.mrf.mxu0
    %v2557 = vadd.f32 %v2543, %v2556
    %v2558 = vpop.f32.mrf.mxu0
    %v2559 = vadd.f32 %v2545, %v2558
    %2560 = vdwg.mxu0
    %2561 = vmatpush.bf16.msra.mxu0 %v2335
    %2562 = vmatpush.bf16.msra.mxu0 %v2332
    %2563 = vmatpush.bf16.msra.mxu0 %v2329
    %2564 = vmatpush.bf16.msra.mxu0 %v2326
    %2565 = vmatpush.bf16.msra.mxu0 %v2323
    %2566 = vmatpush.bf16.msra.mxu0 %v2320
    %2567 = vmatpush.bf16.msra.mxu0 %v2317
    %2568 = vmatpush.bf16.msra.mxu0 %v2314
    %2569 = vmatmul.bf16.gmra.mxu0 %v1853
    %v2570 = vpop.f32.mrf.mxu0
    %v2571 = vadd.f32 %v1988, %v2570
    %v2572 = vpop.f32.mrf.mxu0
    %v2573 = vadd.f32 %v1988, %v2572
    %2574 = vdwg.mxu0
    %2575 = vmatpush.bf16.msra.mxu0 %v2359
    %2576 = vmatpush.bf16.msra.mxu0 %v2356
    %2577 = vmatpush.bf16.msra.mxu0 %v2353
    %2578 = vmatpush.bf16.msra.mxu0 %v2350
    %2579 = vmatpush.bf16.msra.mxu0 %v2347
    %2580 = vmatpush.bf16.msra.mxu0 %v2344
    %2581 = vmatpush.bf16.msra.mxu0 %v2341
    %2582 = vmatpush.bf16.msra.mxu0 %v2338
    %2583 = vmatmul.bf16.gmra.mxu0 %v1854
    %v2584 = vpop.f32.mrf.mxu0
    %v2585 = vadd.f32 %v2571, %v2584
    %v2586 = vpop.f32.mrf.mxu0
    %v2587 = vadd.f32 %v2573, %v2586
    %2588 = vdwg.mxu0
    %2589 = vmatpush.bf16.msra.mxu0 %v2383
    %2590 = vmatpush.bf16.msra.mxu0 %v2380
    %2591 = vmatpush.bf16.msra.mxu0 %v2377
    %2592 = vmatpush.bf16.msra.mxu0 %v2374
    %2593 = vmatpush.bf16.msra.mxu0 %v2371
    %2594 = vmatpush.bf16.msra.mxu0 %v2368
    %2595 = vmatpush.bf16.msra.mxu0 %v2365
    %2596 = vmatpush.bf16.msra.mxu0 %v2362
    %2597 = vmatmul.bf16.gmra.mxu0 %v1855
    %v2598 = vpop.f32.mrf.mxu0
    %v2599 = vadd.f32 %v2585, %v2598
    %v2600 = vpop.f32.mrf.mxu0
    %v2601 = vadd.f32 %v2587, %v2600
    %2602 = vdwg.mxu0
    %2603 = vmatpush.bf16.msra.mxu0 %v2407
    %2604 = vmatpush.bf16.msra.mxu0 %v2404
    %2605 = vmatpush.bf16.msra.mxu0 %v2401
    %2606 = vmatpush.bf16.msra.mxu0 %v2398
    %2607 = vmatpush.bf16.msra.mxu0 %v2395
    %2608 = vmatpush.bf16.msra.mxu0 %v2392
    %2609 = vmatpush.bf16.msra.mxu0 %v2389
    %2610 = vmatpush.bf16.msra.mxu0 %v2386
    %2611 = vmatmul.bf16.gmra.mxu0 %v1856
    %v2612 = vpop.f32.mrf.mxu0
    %v2613 = vadd.f32 %v2599, %v2612
    %v2614 = vpop.f32.mrf.mxu0
    %v2615 = vadd.f32 %v2601, %v2614
    %2616 = vdwg.mxu0
    %2617 = vmatpush.bf16.msra.mxu0 %v2336
    %2618 = vmatpush.bf16.msra.mxu0 %v2333
    %2619 = vmatpush.bf16.msra.mxu0 %v2330
    %2620 = vmatpush.bf16.msra.mxu0 %v2327
    %2621 = vmatpush.bf16.msra.mxu0 %v2324
    %2622 = vmatpush.bf16.msra.mxu0 %v2321
    %2623 = vmatpush.bf16.msra.mxu0 %v2318
    %2624 = vmatpush.bf16.msra.mxu0 %v2315
    %2625 = vmatmul.bf16.gmra.mxu0 %v1853
    %v2626 = vpop.f32.mrf.mxu0
    %v2627 = vadd.f32 %v1989, %v2626
    %v2628 = vpop.f32.mrf.mxu0
    %v2629 = vadd.f32 %v1989, %v2628
    %2630 = vdwg.mxu0
    %2631 = vmatpush.bf16.msra.mxu0 %v2360
    %2632 = vmatpush.bf16.msra.mxu0 %v2357
    %2633 = vmatpush.bf16.msra.mxu0 %v2354
    %2634 = vmatpush.bf16.msra.mxu0 %v2351
    %2635 = vmatpush.bf16.msra.mxu0 %v2348
    %2636 = vmatpush.bf16.msra.mxu0 %v2345
    %2637 = vmatpush.bf16.msra.mxu0 %v2342
    %2638 = vmatpush.bf16.msra.mxu0 %v2339
    %2639 = vmatmul.bf16.gmra.mxu0 %v1854
    %v2640 = vpop.f32.mrf.mxu0
    %v2641 = vadd.f32 %v2627, %v2640
    %v2642 = vpop.f32.mrf.mxu0
    %v2643 = vadd.f32 %v2629, %v2642
    %2644 = vdwg.mxu0
    %2645 = vmatpush.bf16.msra.mxu0 %v2384
    %2646 = vmatpush.bf16.msra.mxu0 %v2381
    %2647 = vmatpush.bf16.msra.mxu0 %v2378
    %2648 = vmatpush.bf16.msra.mxu0 %v2375
    %2649 = vmatpush.bf16.msra.mxu0 %v2372
    %2650 = vmatpush.bf16.msra.mxu0 %v2369
    %2651 = vmatpush.bf16.msra.mxu0 %v2366
    %2652 = vmatpush.bf16.msra.mxu0 %v2363
    %2653 = vmatmul.bf16.gmra.mxu0 %v1855
    %v2654 = vpop.f32.mrf.mxu0
    %v2655 = vadd.f32 %v2641, %v2654
    %v2656 = vpop.f32.mrf.mxu0
    %v2657 = vadd.f32 %v2643, %v2656
    %2658 = vdwg.mxu0
    %2659 = vmatpush.bf16.msra.mxu0 %v2408
    %2660 = vmatpush.bf16.msra.mxu0 %v2405
    %2661 = vmatpush.bf16.msra.mxu0 %v2402
    %2662 = vmatpush.bf16.msra.mxu0 %v2399
    %2663 = vmatpush.bf16.msra.mxu0 %v2396
    %2664 = vmatpush.bf16.msra.mxu0 %v2393
    %2665 = vmatpush.bf16.msra.mxu0 %v2390
    %2666 = vmatpush.bf16.msra.mxu0 %v2387
    %2667 = vmatmul.bf16.gmra.mxu0 %v1856
    %v2668 = vpop.f32.mrf.mxu0
    %v2669 = vadd.f32 %v2655, %v2668
    %v2670 = vpop.f32.mrf.mxu0
    %v2671 = vadd.f32 %v2657, %v2670
    %2672 = vdwg.mxu0
    %v2673 = vmax.f32 %v2557, 0.0
    %v2674 = vmax.f32 %v2613, 0.0
    %v2675 = vmax.f32 %v2669, 0.0
    %v2676 = vmax.f32 %v2559, 0.0
    %v2677 = vmax.f32 %v2615, 0.0
    %v2678 = vmax.f32 %v2671, 0.0
    %v2679 = vpack.c.bf16 %v2676, %v2673
    %v2680 = vpack.c.bf16 %v2677, %v2674
    %v2681 = vpack.c.bf16 %v2678, %v2675
    %v2682 = vld [vmem:[#allocation14] sm:$0xf]
    %v2683 = vld [vmem:[#allocation14 + $0x4] sm:$0xf]
    %v2684 = vld [vmem:[#allocation14 + $0x8] sm:$0xf]
    %v2685 = vld [vmem:[#allocation14 + $0xc] sm:$0xf]
    %v2686 = vld [vmem:[#allocation14 + $0x10] sm:$0xf]
    %v2687 = vld [vmem:[#allocation14 + $0x14] sm:$0xf]
    %v2688 = vld [vmem:[#allocation14 + $0x18] sm:$0xf]
    %v2689 = vld [vmem:[#allocation14 + $0x1c] sm:$0xf]
    %v2690 = vld [vmem:[#allocation14 + $0x20] sm:$0xf]
    %v2691 = vld [vmem:[#allocation14 + $0x24] sm:$0xf]
    %v2692 = vld [vmem:[#allocation14 + $0x28] sm:$0xf]
    %v2693 = vld [vmem:[#allocation14 + $0x2c] sm:$0xf]
    %v2694 = vld [vmem:[#allocation14 + $0x30] sm:$0xf]
    %v2695 = vld [vmem:[#allocation14 + $0x34] sm:$0xf]
    %v2696 = vld [vmem:[#allocation14 + $0x38] sm:$0xf]
    %v2697 = vld [vmem:[#allocation14 + $0x3c] sm:$0xf]
    %v2698 = vld [vmem:[#allocation14 + $0x40] sm:$0xf]
    %v2699 = vld [vmem:[#allocation14 + $0x44] sm:$0xf]
    %v2700 = vld [vmem:[#allocation14 + $0x48] sm:$0xf]
    %v2701 = vld [vmem:[#allocation14 + $0x4c] sm:$0xf]
    %v2702 = vld [vmem:[#allocation14 + $0x50] sm:$0xf]
    %v2703 = vld [vmem:[#allocation14 + $0x54] sm:$0xf]
    %v2704 = vld [vmem:[#allocation14 + $0x58] sm:$0xf]
    %v2705 = vld [vmem:[#allocation14 + $0x5c] sm:$0xf]
    %v2706 = vld [vmem:[#allocation14 + $0x60] sm:$0xf]
    %v2707 = vld [vmem:[#allocation14 + $0x64] sm:$0xf]
    %v2708 = vld [vmem:[#allocation14 + $0x68] sm:$0xf]
    %v2709 = vld [vmem:[#allocation14 + $0x6c] sm:$0xf]
    %v2710 = vld [vmem:[#allocation14 + $0x70] sm:$0xf]
    %v2711 = vld [vmem:[#allocation14 + $0x74] sm:$0xf]
    %v2712 = vld [vmem:[#allocation14 + $0x78] sm:$0xf]
    %v2713 = vld [vmem:[#allocation14 + $0x7c] sm:$0xf]
    %v2714 = vld [vmem:[#allocation14 + $0x80] sm:$0xf]
    %v2715 = vld [vmem:[#allocation14 + $0x84] sm:$0xf]
    %v2716 = vld [vmem:[#allocation14 + $0x88] sm:$0xf]
    %v2717 = vld [vmem:[#allocation14 + $0x8c] sm:$0xf]
    %v2718 = vld [vmem:[#allocation14 + $0x90] sm:$0xf]
    %v2719 = vld [vmem:[#allocation14 + $0x94] sm:$0xf]
    %v2720 = vld [vmem:[#allocation14 + $0x98] sm:$0xf]
    %v2721 = vld [vmem:[#allocation14 + $0x9c] sm:$0xf]
    %v2722 = vld [vmem:[#allocation14 + $0xa0] sm:$0xf]
    %v2723 = vld [vmem:[#allocation14 + $0xa4] sm:$0xf]
    %v2724 = vld [vmem:[#allocation14 + $0xa8] sm:$0xf]
    %v2725 = vld [vmem:[#allocation14 + $0xac] sm:$0xf]
    %v2726 = vld [vmem:[#allocation14 + $0xb0] sm:$0xf]
    %v2727 = vld [vmem:[#allocation14 + $0xb4] sm:$0xf]
    %v2728 = vld [vmem:[#allocation14 + $0xb8] sm:$0xf]
    %v2729 = vld [vmem:[#allocation14 + $0xbc] sm:$0xf]
    %v2730 = vld [vmem:[%s10] sm:$0x1]
    %v2732 = vperm.slane %v2730, 0
    %v2782 = vunpack.c.l.b16 %v2682
    %v2783 = vunpack.c.l.b16 %v2683
    %v2784 = vunpack.c.l.b16 %v2684
    %v2785 = vunpack.c.l.b16 %v2685
    %v2786 = vunpack.c.l.b16 %v2686
    %v2787 = vunpack.c.l.b16 %v2687
    %v2788 = vunpack.c.l.b16 %v2688
    %v2789 = vunpack.c.l.b16 %v2689
    %v2790 = vunpack.c.l.b16 %v2690
    %v2791 = vunpack.c.l.b16 %v2691
    %v2792 = vunpack.c.l.b16 %v2692
    %v2793 = vunpack.c.l.b16 %v2693
    %v2794 = vunpack.c.l.b16 %v2694
    %v2795 = vunpack.c.l.b16 %v2695
    %v2796 = vunpack.c.l.b16 %v2696
    %v2797 = vunpack.c.l.b16 %v2697
    %v2798 = vunpack.c.l.b16 %v2698
    %v2799 = vunpack.c.l.b16 %v2699
    %v2800 = vunpack.c.l.b16 %v2700
    %v2801 = vunpack.c.l.b16 %v2701
    %v2802 = vunpack.c.l.b16 %v2702
    %v2803 = vunpack.c.l.b16 %v2703
    %v2804 = vunpack.c.l.b16 %v2704
    %v2805 = vunpack.c.l.b16 %v2705
    %v2806 = vunpack.c.l.b16 %v2706
    %v2807 = vunpack.c.l.b16 %v2707
    %v2808 = vunpack.c.l.b16 %v2708
    %v2809 = vunpack.c.l.b16 %v2709
    %v2810 = vunpack.c.l.b16 %v2710
    %v2811 = vunpack.c.l.b16 %v2711
    %v2812 = vunpack.c.l.b16 %v2712
    %v2813 = vunpack.c.l.b16 %v2713
    %v2814 = vunpack.c.l.b16 %v2714
    %v2815 = vunpack.c.l.b16 %v2715
    %v2816 = vunpack.c.l.b16 %v2716
    %v2817 = vunpack.c.l.b16 %v2717
    %v2818 = vunpack.c.l.b16 %v2718
    %v2819 = vunpack.c.l.b16 %v2719
    %v2820 = vunpack.c.l.b16 %v2720
    %v2821 = vunpack.c.l.b16 %v2721
    %v2822 = vunpack.c.l.b16 %v2722
    %v2823 = vunpack.c.l.b16 %v2723
    %v2824 = vunpack.c.l.b16 %v2724
    %v2825 = vunpack.c.l.b16 %v2725
    %v2826 = vunpack.c.l.b16 %v2726
    %v2827 = vunpack.c.l.b16 %v2727
    %v2828 = vunpack.c.l.b16 %v2728
    %v2829 = vunpack.c.l.b16 %v2729
    %v2830 = vpack.c.b16 %v2783, %v2782
    %v2831 = vpack.c.b16 %v2785, %v2784
    %v2832 = vpack.c.b16 %v2787, %v2786
    %v2833 = vpack.c.b16 %v2789, %v2788
    %v2834 = vpack.c.b16 %v2791, %v2790
    %v2835 = vpack.c.b16 %v2793, %v2792
    %v2836 = vpack.c.b16 %v2795, %v2794
    %v2837 = vpack.c.b16 %v2797, %v2796
    %v2838 = vpack.c.b16 %v2799, %v2798
    %v2839 = vpack.c.b16 %v2801, %v2800
    %v2840 = vpack.c.b16 %v2803, %v2802
    %v2841 = vpack.c.b16 %v2805, %v2804
    %v2842 = vpack.c.b16 %v2807, %v2806
    %v2843 = vpack.c.b16 %v2809, %v2808
    %v2844 = vpack.c.b16 %v2811, %v2810
    %v2845 = vpack.c.b16 %v2813, %v2812
    %v2846 = vpack.c.b16 %v2815, %v2814
    %v2847 = vpack.c.b16 %v2817, %v2816
    %v2848 = vpack.c.b16 %v2819, %v2818
    %v2849 = vpack.c.b16 %v2821, %v2820
    %v2850 = vpack.c.b16 %v2823, %v2822
    %v2851 = vpack.c.b16 %v2825, %v2824
    %v2852 = vpack.c.b16 %v2827, %v2826
    %v2853 = vpack.c.b16 %v2829, %v2828
    %2878 = vmatpush.bf16.msra.mxu0 %v2837
    %2879 = vmatpush.bf16.msra.mxu0 %v2836
    %2880 = vmatpush.bf16.msra.mxu0 %v2835
    %2881 = vmatpush.bf16.msra.mxu0 %v2834
    %2882 = vmatpush.bf16.msra.mxu0 %v2833
    %2883 = vmatpush.bf16.msra.mxu0 %v2832
    %2884 = vmatpush.bf16.msra.mxu0 %v2831
    %2885 = vmatpush.bf16.msra.mxu0 %v2830
    %2886 = vmatmul.bf16.gmra.mxu0 %v2679
    %v2887 = vpop.f32.mrf.mxu0
    %v2888 = vadd.f32 %v2732, %v2887
    %v2889 = vpop.f32.mrf.mxu0
    %v2890 = vadd.f32 %v2732, %v2889
    %2891 = vdwg.mxu0
    %2892 = vmatpush.bf16.msra.mxu0 %v2845
    %2893 = vmatpush.bf16.msra.mxu0 %v2844
    %2894 = vmatpush.bf16.msra.mxu0 %v2843
    %2895 = vmatpush.bf16.msra.mxu0 %v2842
    %2896 = vmatpush.bf16.msra.mxu0 %v2841
    %2897 = vmatpush.bf16.msra.mxu0 %v2840
    %2898 = vmatpush.bf16.msra.mxu0 %v2839
    %2899 = vmatpush.bf16.msra.mxu0 %v2838
    %2900 = vmatmul.bf16.gmra.mxu0 %v2680
    %v2901 = vpop.f32.mrf.mxu0
    %v2902 = vadd.f32 %v2888, %v2901
    %v2903 = vpop.f32.mrf.mxu0
    %v2904 = vadd.f32 %v2890, %v2903
    %2905 = vdwg.mxu0
    %2906 = vmatpush.bf16.msra.mxu0 %v2853
    %2907 = vmatpush.bf16.msra.mxu0 %v2852
    %2908 = vmatpush.bf16.msra.mxu0 %v2851
    %2909 = vmatpush.bf16.msra.mxu0 %v2850
    %2910 = vmatpush.bf16.msra.mxu0 %v2849
    %2911 = vmatpush.bf16.msra.mxu0 %v2848
    %2912 = vmatpush.bf16.msra.mxu0 %v2847
    %2913 = vmatpush.bf16.msra.mxu0 %v2846
    %2914 = vmatmul.bf16.gmra.mxu0 %v2681
    %v2915 = vpop.f32.mrf.mxu0
    %v2916 = vadd.f32 %v2902, %v2915
    %v2917 = vpop.f32.mrf.mxu0
    %v2918 = vadd.f32 %v2904, %v2917
    %2919 = vdwg.mxu0
    %v2920 = vmax.f32 %v2916, 0.0
    %v2921 = vmax.f32 %v2918, 0.0
    %v2922 = vpack.c.bf16 %v2921, %v2920
    %v2923 = vld [vmem:[#allocation16] sm:$0xf]
    %v2924 = vld [vmem:[#allocation16 + $0x4] sm:$0xf]
    %v2925 = vld [vmem:[#allocation16 + $0x8] sm:$0xf]
    %v2926 = vld [vmem:[#allocation16 + $0xc] sm:$0xf]
    %v2927 = vld [vmem:[#allocation16 + $0x10] sm:$0xf]
    %v2928 = vld [vmem:[#allocation16 + $0x14] sm:$0xf]
    %v2929 = vld [vmem:[#allocation16 + $0x18] sm:$0xf]
    %v2930 = vld [vmem:[#allocation16 + $0x1c] sm:$0xf]
    %v2931 = vld [vmem:[#allocation16 + $0x20] sm:$0xf]
    %v2932 = vld [vmem:[#allocation16 + $0x24] sm:$0xf]
    %v2933 = vld [vmem:[#allocation16 + $0x28] sm:$0xf]
    %v2934 = vld [vmem:[#allocation16 + $0x2c] sm:$0xf]
    %v2935 = vld [vmem:[#allocation16 + $0x30] sm:$0xf]
    %v2936 = vld [vmem:[#allocation16 + $0x34] sm:$0xf]
    %v2937 = vld [vmem:[#allocation16 + $0x38] sm:$0xf]
    %v2938 = vld [vmem:[#allocation16 + $0x3c] sm:$0xf]
    %v2939 = vld [vmem:[%s12] sm:$0x1]
    %v2941 = vperm.slane %v2939, 0
    %v2959 = vunpack.c.l.b16 %v2923
    %v2960 = vunpack.c.l.b16 %v2924
    %v2961 = vunpack.c.l.b16 %v2925
    %v2962 = vunpack.c.l.b16 %v2926
    %v2963 = vunpack.c.l.b16 %v2927
    %v2964 = vunpack.c.l.b16 %v2928
    %v2965 = vunpack.c.l.b16 %v2929
    %v2966 = vunpack.c.l.b16 %v2930
    %v2967 = vunpack.c.l.b16 %v2931
    %v2968 = vunpack.c.l.b16 %v2932
    %v2969 = vunpack.c.l.b16 %v2933
    %v2970 = vunpack.c.l.b16 %v2934
    %v2971 = vunpack.c.l.b16 %v2935
    %v2972 = vunpack.c.l.b16 %v2936
    %v2973 = vunpack.c.l.b16 %v2937
    %v2974 = vunpack.c.l.b16 %v2938
    %v2975 = vpack.c.b16 %v2960, %v2959
    %v2976 = vpack.c.b16 %v2962, %v2961
    %v2977 = vpack.c.b16 %v2964, %v2963
    %v2978 = vpack.c.b16 %v2966, %v2965
    %v2979 = vpack.c.b16 %v2968, %v2967
    %v2980 = vpack.c.b16 %v2970, %v2969
    %v2981 = vpack.c.b16 %v2972, %v2971
    %v2982 = vpack.c.b16 %v2974, %v2973
    %2991 = vmatpush.bf16.msra.mxu0 %v2982
    %2992 = vmatpush.bf16.msra.mxu0 %v2981
    %2993 = vmatpush.bf16.msra.mxu0 %v2980
    %2994 = vmatpush.bf16.msra.mxu0 %v2979
    %2995 = vmatpush.bf16.msra.mxu0 %v2978
    %2996 = vmatpush.bf16.msra.mxu0 %v2977
    %2997 = vmatpush.bf16.msra.mxu0 %v2976
    %2998 = vmatpush.bf16.msra.mxu0 %v2975
    %2999 = vmatmul.bf16.gmra.mxu0 %v2922
    %v3000 = vpop.f32.mrf.mxu0
    %v3001 = vadd.f32 %v2941, %v3000
    %v3002 = vpop.f32.mrf.mxu0
    %v3003 = vadd.f32 %v2941, %v3002
    %3004 = vdwg.mxu0
    %3005 = vst [vmem:[#allocation17] sm:$0xff] %v3001
    %3006 = vst [vmem:[#allocation17 + $0x8] sm:$0xff] %v3003
    // Predicated region
    $region90: #{tpu_custom_call.1} parent=1 // pred_check
      _
    $region91: #{tpu_custom_call.1} parent=1 // pred_check_branch
      %3008 = sbr.rel (0) target = $region93
    $region92: #{tpu_custom_call.1} parent=1 // pred_region
      %3010 = vsyncadd [#allocation4], 0
      %s3011 = sshll.u32 [#allocation17], 4
      %s3012 = int_to_ptr.vmem [resolvable:$true] %s3011
      %s3013 = sshll.u32 %s13, 4
      %s3014 = int_to_ptr.hbm [resolvable:$true] %s3013
      %3019 = dma.vmem_to_hbm [thread:$0]  %s3012, 256, %s3014, [#allocation4], 128, 128, 8
    $region93: #{tpu_custom_call.1} parent=1 // pred_fallthru
      _
    // Predicated region
    $region94: #{tpu_custom_call.1} parent=1 // pred_check
      _
    $region95: #{tpu_custom_call.1} parent=1 // pred_check_branch
      %3021 = sbr.rel (0) target = $region97
    $region96: #{tpu_custom_call.1} parent=1 // pred_region
      %3023 = dma.done [#allocation4], 256
    $region97: #{tpu_custom_call.1} parent=1 // pred_fallthru
      _
    %3024 = vsyncpa [#allocation3], 1
    %3025 = vsyncpa [#allocation6], 1
    %3026 = vsyncpa [#allocation9], 1
    %3027 = vsyncpa [#allocation12], 1
    %3028 = vsyncpa [#allocation15], 1
    %3029 = vsyncpa [#allocation4], 1

</llo_original>
